<compile_context>
chip_gen: v7x
topology: tpu7x:2x2x1
jax: 0.10.0
libtpu: 0.0.40
codegen_flags: <defaults>
</compile_context>

<pallas_src>
import functools

import jax
import jax.numpy as jnp
import numpy as np
from jax.experimental import pallas as pl
from jax.experimental.pallas import tpu as pltpu


def _round_up(a: int, m: int) -> int:
    return (a + m - 1) // m * m


def _edgeconv_kernel(k, c_in, x_ref, xj_ref, valid_ref, w1_ref, w2_ref, wid_ref, b_ref, out_ref):
    """One node tile of the fused DenseGraphBlock forward.

    x_ref     : [tN, c_in]     node features (narrow)
    xj_ref    : [tN, kc_pad]   gathered neighbour features, packed [k * c_in] lane-dense
    valid_ref : [tN, k]        1.0 where the neighbour slot is a real edge
    w1_ref    : [c_in, c_pad]  (W1 - W2), zero-embedded at output lanes [c_in, c_in + c_out)
    w2_ref    : [c_in, c_pad]  W2, zero-embedded the same way
    wid_ref   : [c_in, c_pad]  identity, embedded at lanes [0, c_in)  (fused x-copy)
    b_ref     : [1, c_pad]     bias, zero-embedded at [c_in, c_in + c_out)
    out_ref   : [tN, c_pad]    fused [x | max_k ReLU(...) | 0] row  (single lane-dense store)
    """
    x_i = x_ref[...]                                              # [tN, c_in]
    valid = valid_ref[...]                                        # [tN, k]

    # Per-node terms (computed once): hi = x_i @ (W1 - W2) + b ;  base = x embedded at lanes [0,c_in)
    hi = jnp.dot(x_i, w1_ref[...], preferred_element_type=jnp.float32) + b_ref[...]
    base = jnp.dot(x_i, wid_ref[...], preferred_element_type=jnp.float32)

    # Streamed max over the K neighbour slots: live intermediates stay [tN, c_pad].
    acc = jnp.zeros_like(hi)
    for kk in range(k):                                           # static, small K -> unrolled
        xk = xj_ref[:, kk * c_in:(kk + 1) * c_in]                 # [tN, c_in] static lane slice
        hk = jnp.dot(xk, w2_ref[...], preferred_element_type=jnp.float32)
        # ReLU >= 0, so multiplying by the validity mask is equivalent to -inf masking + the
        # has_edge fixup (no-edge nodes end up at exactly 0, matching the reference).
        h = jnp.maximum(hi + hk, 0.0) * valid[:, kk:kk + 1]
        acc = jnp.maximum(acc, h)

    # agg is 0 in the x lanes (weights/bias are zero there), so base + acc is the fused concat.
    out_ref[...] = (base + acc).astype(out_ref.dtype)


def _build_neighbor_table(edge_index, num_nodes, k_max):
    """edge_index [2, E] (src=row0, tgt=row1) -> nbr[N, k_max] int32, valid[N, k_max] f32."""
    src = edge_index[0].astype(jnp.int32)
    tgt = edge_index[1].astype(jnp.int32)
    num_edges = src.shape[0]

    deg = jnp.zeros((num_nodes,), jnp.int32).at[tgt].add(1)

    # Eager-only sanity check (under jit, edges beyond k_max are silently dropped).
    overflow = None
    try:
        if num_edges > 0:
            overflow = int(jnp.max(deg)) > k_max
    except Exception:
        overflow = None  # traced under jit; TODO(synk): dynamic overflow handling
    if overflow:
        raise ValueError(f"max in-degree exceeds k_max={k_max}; increase k_max")

    start = jnp.cumsum(deg) - deg                               # first slot of each target
    order = jnp.argsort(tgt)                                    # group edges by target node
    t_s = tgt[order]
    s_s = src[order]
    pos = jnp.arange(num_edges, dtype=jnp.int32) - start[t_s]   # slot within the target's list

    nbr = jnp.zeros((num_nodes, k_max), jnp.int32).at[t_s, pos].set(s_s, mode="drop")
    valid = jnp.zeros((num_nodes, k_max), jnp.float32).at[t_s, pos].set(1.0, mode="drop")
    return nbr, valid


def dense_graph_block(x, edge_index, w, b, *, k_max, tile_n=None,
                      use_bf16_inputs=False, return_padded=False):
    """DenseGraphBlock forward.

    x: [N, C_in] f32, edge_index: [2, E] int32 (row0=src, row1=tgt),
    w: [2*C_in, C_out], b: [C_out], k_max: static max in-degree.
    Returns (cat([x, EdgeConv(x)], axis=1), edge_index).
    """
    n_nodes, c_in = x.shape
    assert w.shape[0] == 2 * c_in
    c_out = w.shape[1]
    c_total = c_in + c_out
    c_pad = _round_up(c_total, 128)            # fused lane-dense output width
    k = max(int(k_max), 1)
    kc = k * c_in
    kc_pad = _round_up(kc, 128)                # lane-dense packed neighbour width

    in_dtype = jnp.bfloat16 if use_bf16_inputs else jnp.float32
    esize = 2 if use_bf16_inputs else 4

    # --- VMEM budget (per generation) and adaptive tile size -----------------------------------
    try:
        vmem_cap = int(getattr(pltpu.get_tpu_info(), "vmem_capacity_bytes", 64 * 1024 * 1024))
    except Exception:
        vmem_cap = 64 * 1024 * 1024
    vmem_limit = max(16 << 20, min((vmem_cap * 3) // 4, 112 << 20))   # ~48 MiB v7x, ~96 MiB v5e/v6e

    # double-buffered streamed blocks (x, xj, valid lane-pad to 128) + f32 out + f32 temporaries
    row_bytes = 2 * esize * (128 + kc_pad + 128) + 2 * 4 * c_pad + 6 * 4 * c_pad
    cap_rows = max(8, ((vmem_limit // 2) // row_bytes) // 8 * 8)
    t = 1024 if tile_n is None else int(tile_n)
    t = max(8, min(t, cap_rows, _round_up(n_nodes, 8)))
    t = (t // 8) * 8
    if _round_up(n_nodes, t) // t < 2 and n_nodes > 8:
        # ensure >= 2 grid steps so the 'parallel' node axis shards across v7x's 2 TensorCores
        t = max(8, _round_up((n_nodes + 1) // 2, 8))
    n_pad = _round_up(n_nodes, t)

    # --- glue: edge list -> padded neighbour table ----------------------------------------------
    nbr, valid = _build_neighbor_table(edge_index, n_nodes, k)
    if n_pad > n_nodes:
        nbr = jnp.pad(nbr, ((0, n_pad - n_nodes), (0, 0)))
        valid = jnp.pad(valid, ((0, n_pad - n_nodes), (0, 0)))

    x_f = x.astype(in_dtype)
    x_rows = jnp.pad(x_f, ((0, n_pad - n_nodes), (0, 0))) if n_pad > n_nodes else x_f

    # Neighbour-feature gather, packed lane-dense as [N, K*c_in] (no duplicate x copies).
    # TODO(synk): move this gather in-kernel (VMEM-resident node table + SMEM index block) to
    #             remove the remaining E*c_in HBM write+read of the gathered buffer.
    xj = jnp.take(x_f, nbr.reshape(-1), axis=0).reshape(n_pad, kc)
    if kc_pad > kc:
        xj = jnp.pad(xj, ((0, 0), (0, kc_pad - kc)))

    # MLP weights / bias, reformulated and zero-embedded into the fused output layout.
    wf = w.astype(jnp.float32)
    bf = b.astype(jnp.float32)
    w1 = wf[:c_in]
    w2 = wf[c_in:]
    w1p = jnp.zeros((c_in, c_pad), jnp.float32).at[:, c_in:c_total].set(w1 - w2).astype(in_dtype)
    w2p = jnp.zeros((c_in, c_pad), jnp.float32).at[:, c_in:c_total].set(w2).astype(in_dtype)
    widp = jnp.zeros((c_in, c_pad), jnp.float32).at[:, :c_in].set(jnp.eye(c_in, dtype=jnp.float32)
                                                                  ).astype(in_dtype)
    bp = jnp.zeros((1, c_pad), jnp.float32).at[:, c_in:c_total].set(bf)

    grid = (n_pad // t,)
    kernel = functools.partial(_edgeconv_kernel, k, c_in)

    out = pl.pallas_call(
        kernel,
        out_shape=jax.ShapeDtypeStruct((n_pad, c_pad), jnp.float32),
        grid=grid,
        in_specs=[
            pl.BlockSpec((t, c_in), lambda i: (i, 0)),        # x (narrow)
            pl.BlockSpec((t, kc_pad), lambda i: (i, 0)),      # packed neighbour features
            pl.BlockSpec((t, k), lambda i: (i, 0)),           # validity mask
            pl.BlockSpec((c_in, c_pad), lambda i: (0, 0)),    # W1 - W2   (resident)
            pl.BlockSpec((c_in, c_pad), lambda i: (0, 0)),    # W2        (resident)
            pl.BlockSpec((c_in, c_pad), lambda i: (0, 0)),    # identity  (resident)
            pl.BlockSpec((1, c_pad), lambda i: (0, 0)),       # bias      (resident)
        ],
        out_specs=pl.BlockSpec((t, c_pad), lambda i: (i, 0)),
        compiler_params=pltpu.CompilerParams(
            dimension_semantics=("parallel",),                # node tiles shard across TCs
            vmem_limit_bytes=int(vmem_limit),
        ),
    )(x_rows, xj, valid, w1p, w2p, widp, bp)

    if return_padded:
        # TODO(synk): when stacking DenseGraphBlocks, keep this padded layout end-to-end to skip
        #             one read+write of the output per layer.
        return out, edge_index
    return out[:n_nodes, :c_total], edge_index


def _reference(x, edge_index, w, b):
    """Pure-JAX reference for EdgeConv(max) + dense concat (f32-accurate matmul)."""
    src, tgt = edge_index
    x_i = x[tgt]
    x_j = x[src]
    feats = jnp.concatenate([x_i, x_j - x_i], axis=-1)
    h = jnp.maximum(jnp.dot(feats, w, precision=jax.lax.Precision.HIGHEST) + b, 0.0)
    out = jax.ops.segment_max(h, tgt, num_segments=x.shape[0])
    out = jnp.where(jnp.isneginf(out), 0.0, out)
    return jnp.concatenate([x, out], axis=1)


if __name__ == "__main__":
    N, C_in, C_out, K = 64, 8, 16, 8            # 64 nodes, 8 incoming edges each

    key = jax.random.PRNGKey(0)
    kx, kw, kb = jax.random.split(key, 3)
    x = jax.random.normal(kx, (N, C_in), dtype=jnp.float32)
    # deterministic parameter init for Linear(2*C_in, C_out, bias=True)
    w = jax.random.normal(kw, (2 * C_in, C_out), dtype=jnp.float32) * (1.0 / np.sqrt(2 * C_in))
    b = jax.random.normal(kb, (C_out,), dtype=jnp.float32) * 0.1

    # k-regular ring graph: node i receives edges from (i+1..i+K) mod N
    tgt = np.repeat(np.arange(N), K)
    src = (tgt + np.tile(np.arange(1, K + 1), N)) % N
    edge_index = jnp.asarray(np.stack([src, tgt]), dtype=jnp.int32)   # [2, E]

    out_feat, out_edges = dense_graph_block(x, edge_index, w, b, k_max=K)
    out_feat = jax.block_until_ready(out_feat)

    ref_feat = _reference(x, edge_index, w, b)
    assert out_feat.shape == (N, C_in + C_out)
    assert np.allclose(np.asarray(out_feat), np.asarray(ref_feat), atol=1e-4, rtol=1e-4)
    assert np.array_equal(np.asarray(out_edges), np.asarray(edge_index))
    print("KERNEL_OK")
</pallas_src>

<mosaic_0001>
module attributes {stable_mosaic.version = 11 : i64} {
  func.func @_edgeconv_kernel(%arg0: i32, %arg1: memref<32x8xf32, #tpu.memory_space<vmem>>, %arg2: memref<32x128xf32, #tpu.memory_space<vmem>>, %arg3: memref<32x8xf32, #tpu.memory_space<vmem>>, %arg4: memref<8x128xf32, #tpu.memory_space<vmem>>, %arg5: memref<8x128xf32, #tpu.memory_space<vmem>>, %arg6: memref<8x128xf32, #tpu.memory_space<vmem>>, %arg7: memref<1x128xf32, #tpu.memory_space<vmem>>, %arg8: memref<32x128xf32, #tpu.memory_space<vmem>>) attributes {dimension_semantics = [#tpu.dimension_semantics<parallel>], iteration_bounds = array<i64: 2>, scalar_prefetch = 0 : i64, scratch_operands = 0 : i64, tpu.core_type = #tpu.core_type<tc>, window_params = [{transform_indices = @transform_0, window_bounds = array<i64: 32, 8>}, {transform_indices = @transform_1, window_bounds = array<i64: 32, 128>}, {transform_indices = @transform_2, window_bounds = array<i64: 32, 8>}, {pipeline_mode = #tpu.pipeline_mode<synchronous>, transform_indices = @transform_3, window_bounds = array<i64: 8, 128>}, {pipeline_mode = #tpu.pipeline_mode<synchronous>, transform_indices = @transform_4, window_bounds = array<i64: 8, 128>}, {pipeline_mode = #tpu.pipeline_mode<synchronous>, transform_indices = @transform_5, window_bounds = array<i64: 8, 128>}, {pipeline_mode = #tpu.pipeline_mode<synchronous>, transform_indices = @transform_6, window_bounds = array<i64: 1, 128>}, {transform_indices = @transform_7, window_bounds = array<i64: 32, 128>}]} {
    %c0 = arith.constant 0 : index
    %c0_0 = arith.constant 0 : index
    %0 = vector.load %arg1[%c0, %c0_0] : memref<32x8xf32, #tpu.memory_space<vmem>>, vector<32x8xf32>
    %c0_1 = arith.constant 0 : index
    %c0_2 = arith.constant 0 : index
    %1 = vector.load %arg3[%c0_1, %c0_2] : memref<32x8xf32, #tpu.memory_space<vmem>>, vector<32x8xf32>
    %c0_3 = arith.constant 0 : index
    %c0_4 = arith.constant 0 : index
    %2 = vector.load %arg4[%c0_3, %c0_4] : memref<8x128xf32, #tpu.memory_space<vmem>>, vector<8x128xf32>
    %cst = arith.constant dense<0.000000e+00> : vector<32x128xf32>
    %3 = tpu.matmul %0, %2, %cst {dimension_numbers = #tpu.dot_dimension_numbers<[1], [0], [0], [1], [0, 0, 1, 1], [], []>} : vector<32x8xf32>, vector<8x128xf32>, vector<32x128xf32> -> vector<32x128xf32>
    %c0_5 = arith.constant 0 : index
    %c0_6 = arith.constant 0 : index
    %4 = vector.load %arg7[%c0_5, %c0_6] : memref<1x128xf32, #tpu.memory_space<vmem>>, vector<1x128xf32>
    %5 = vector.broadcast %4 : vector<1x128xf32> to vector<32x128xf32>
    %6 = arith.addf %3, %5 : vector<32x128xf32>
    %c0_7 = arith.constant 0 : index
    %c0_8 = arith.constant 0 : index
    %7 = vector.load %arg6[%c0_7, %c0_8] : memref<8x128xf32, #tpu.memory_space<vmem>>, vector<8x128xf32>
    %cst_9 = arith.constant dense<0.000000e+00> : vector<32x128xf32>
    %8 = tpu.matmul %0, %7, %cst_9 {dimension_numbers = #tpu.dot_dimension_numbers<[1], [0], [0], [1], [0, 0, 1, 1], [], []>} : vector<32x8xf32>, vector<8x128xf32>, vector<32x128xf32> -> vector<32x128xf32>
    %cst_10 = arith.constant 0.000000e+00 : f32
    %9 = vector.broadcast %cst_10 : f32 to vector<32x128xf32>
    %c0_11 = arith.constant 0 : index
    %c0_12 = arith.constant 0 : index
    %10 = vector.load %arg2[%c0_11, %c0_12] : memref<32x128xf32, #tpu.memory_space<vmem>>, vector<32x8xf32>
    %c0_13 = arith.constant 0 : index
    %c0_14 = arith.constant 0 : index
    %11 = vector.load %arg5[%c0_13, %c0_14] : memref<8x128xf32, #tpu.memory_space<vmem>>, vector<8x128xf32>
    %cst_15 = arith.constant dense<0.000000e+00> : vector<32x128xf32>
    %12 = tpu.matmul %10, %11, %cst_15 {dimension_numbers = #tpu.dot_dimension_numbers<[1], [0], [0], [1], [0, 0, 1, 1], [], []>} : vector<32x8xf32>, vector<8x128xf32>, vector<32x128xf32> -> vector<32x128xf32>
    %13 = arith.addf %6, %12 : vector<32x128xf32>
    %cst_16 = arith.constant 0.000000e+00 : f32
    %14 = vector.broadcast %cst_16 : f32 to vector<32x128xf32>
    %15 = arith.maximumf %13, %14 : vector<32x128xf32>
    %16 = vector.extract_strided_slice %1 {offsets = [0, 0], sizes = [32, 1], strides = [1, 1]} : vector<32x8xf32> to vector<32x1xf32>
    %17 = vector.broadcast %16 : vector<32x1xf32> to vector<32x128xf32>
    %18 = arith.mulf %15, %17 : vector<32x128xf32>
    %19 = arith.maximumf %9, %18 : vector<32x128xf32>
    %c0_17 = arith.constant 0 : index
    %c8 = arith.constant 8 : index
    %20 = vector.load %arg2[%c0_17, %c8] : memref<32x128xf32, #tpu.memory_space<vmem>>, vector<32x8xf32>
    %c0_18 = arith.constant 0 : index
    %c0_19 = arith.constant 0 : index
    %21 = vector.load %arg5[%c0_18, %c0_19] : memref<8x128xf32, #tpu.memory_space<vmem>>, vector<8x128xf32>
    %cst_20 = arith.constant dense<0.000000e+00> : vector<32x128xf32>
    %22 = tpu.matmul %20, %21, %cst_20 {dimension_numbers = #tpu.dot_dimension_numbers<[1], [0], [0], [1], [0, 0, 1, 1], [], []>} : vector<32x8xf32>, vector<8x128xf32>, vector<32x128xf32> -> vector<32x128xf32>
    %23 = arith.addf %6, %22 : vector<32x128xf32>
    %cst_21 = arith.constant 0.000000e+00 : f32
    %24 = vector.broadcast %cst_21 : f32 to vector<32x128xf32>
    %25 = arith.maximumf %23, %24 : vector<32x128xf32>
    %26 = vector.extract_strided_slice %1 {offsets = [0, 1], sizes = [32, 1], strides = [1, 1]} : vector<32x8xf32> to vector<32x1xf32>
    %27 = vector.broadcast %26 : vector<32x1xf32> to vector<32x128xf32>
    %28 = arith.mulf %25, %27 : vector<32x128xf32>
    %29 = arith.maximumf %19, %28 : vector<32x128xf32>
    %c0_22 = arith.constant 0 : index
    %c16 = arith.constant 16 : index
    %30 = vector.load %arg2[%c0_22, %c16] : memref<32x128xf32, #tpu.memory_space<vmem>>, vector<32x8xf32>
    %c0_23 = arith.constant 0 : index
    %c0_24 = arith.constant 0 : index
    %31 = vector.load %arg5[%c0_23, %c0_24] : memref<8x128xf32, #tpu.memory_space<vmem>>, vector<8x128xf32>
    %cst_25 = arith.constant dense<0.000000e+00> : vector<32x128xf32>
    %32 = tpu.matmul %30, %31, %cst_25 {dimension_numbers = #tpu.dot_dimension_numbers<[1], [0], [0], [1], [0, 0, 1, 1], [], []>} : vector<32x8xf32>, vector<8x128xf32>, vector<32x128xf32> -> vector<32x128xf32>
    %33 = arith.addf %6, %32 : vector<32x128xf32>
    %cst_26 = arith.constant 0.000000e+00 : f32
    %34 = vector.broadcast %cst_26 : f32 to vector<32x128xf32>
    %35 = arith.maximumf %33, %34 : vector<32x128xf32>
    %36 = vector.extract_strided_slice %1 {offsets = [0, 2], sizes = [32, 1], strides = [1, 1]} : vector<32x8xf32> to vector<32x1xf32>
    %37 = vector.broadcast %36 : vector<32x1xf32> to vector<32x128xf32>
    %38 = arith.mulf %35, %37 : vector<32x128xf32>
    %39 = arith.maximumf %29, %38 : vector<32x128xf32>
    %c0_27 = arith.constant 0 : index
    %c24 = arith.constant 24 : index
    %40 = vector.load %arg2[%c0_27, %c24] : memref<32x128xf32, #tpu.memory_space<vmem>>, vector<32x8xf32>
    %c0_28 = arith.constant 0 : index
    %c0_29 = arith.constant 0 : index
    %41 = vector.load %arg5[%c0_28, %c0_29] : memref<8x128xf32, #tpu.memory_space<vmem>>, vector<8x128xf32>
    %cst_30 = arith.constant dense<0.000000e+00> : vector<32x128xf32>
    %42 = tpu.matmul %40, %41, %cst_30 {dimension_numbers = #tpu.dot_dimension_numbers<[1], [0], [0], [1], [0, 0, 1, 1], [], []>} : vector<32x8xf32>, vector<8x128xf32>, vector<32x128xf32> -> vector<32x128xf32>
    %43 = arith.addf %6, %42 : vector<32x128xf32>
    %cst_31 = arith.constant 0.000000e+00 : f32
    %44 = vector.broadcast %cst_31 : f32 to vector<32x128xf32>
    %45 = arith.maximumf %43, %44 : vector<32x128xf32>
    %46 = vector.extract_strided_slice %1 {offsets = [0, 3], sizes = [32, 1], strides = [1, 1]} : vector<32x8xf32> to vector<32x1xf32>
    %47 = vector.broadcast %46 : vector<32x1xf32> to vector<32x128xf32>
    %48 = arith.mulf %45, %47 : vector<32x128xf32>
    %49 = arith.maximumf %39, %48 : vector<32x128xf32>
    %c0_32 = arith.constant 0 : index
    %c32 = arith.constant 32 : index
    %50 = vector.load %arg2[%c0_32, %c32] : memref<32x128xf32, #tpu.memory_space<vmem>>, vector<32x8xf32>
    %c0_33 = arith.constant 0 : index
    %c0_34 = arith.constant 0 : index
    %51 = vector.load %arg5[%c0_33, %c0_34] : memref<8x128xf32, #tpu.memory_space<vmem>>, vector<8x128xf32>
    %cst_35 = arith.constant dense<0.000000e+00> : vector<32x128xf32>
    %52 = tpu.matmul %50, %51, %cst_35 {dimension_numbers = #tpu.dot_dimension_numbers<[1], [0], [0], [1], [0, 0, 1, 1], [], []>} : vector<32x8xf32>, vector<8x128xf32>, vector<32x128xf32> -> vector<32x128xf32>
    %53 = arith.addf %6, %52 : vector<32x128xf32>
    %cst_36 = arith.constant 0.000000e+00 : f32
    %54 = vector.broadcast %cst_36 : f32 to vector<32x128xf32>
    %55 = arith.maximumf %53, %54 : vector<32x128xf32>
    %56 = vector.extract_strided_slice %1 {offsets = [0, 4], sizes = [32, 1], strides = [1, 1]} : vector<32x8xf32> to vector<32x1xf32>
    %57 = vector.broadcast %56 : vector<32x1xf32> to vector<32x128xf32>
    %58 = arith.mulf %55, %57 : vector<32x128xf32>
    %59 = arith.maximumf %49, %58 : vector<32x128xf32>
    %c0_37 = arith.constant 0 : index
    %c40 = arith.constant 40 : index
    %60 = vector.load %arg2[%c0_37, %c40] : memref<32x128xf32, #tpu.memory_space<vmem>>, vector<32x8xf32>
    %c0_38 = arith.constant 0 : index
    %c0_39 = arith.constant 0 : index
    %61 = vector.load %arg5[%c0_38, %c0_39] : memref<8x128xf32, #tpu.memory_space<vmem>>, vector<8x128xf32>
    %cst_40 = arith.constant dense<0.000000e+00> : vector<32x128xf32>
    %62 = tpu.matmul %60, %61, %cst_40 {dimension_numbers = #tpu.dot_dimension_numbers<[1], [0], [0], [1], [0, 0, 1, 1], [], []>} : vector<32x8xf32>, vector<8x128xf32>, vector<32x128xf32> -> vector<32x128xf32>
    %63 = arith.addf %6, %62 : vector<32x128xf32>
    %cst_41 = arith.constant 0.000000e+00 : f32
    %64 = vector.broadcast %cst_41 : f32 to vector<32x128xf32>
    %65 = arith.maximumf %63, %64 : vector<32x128xf32>
    %66 = vector.extract_strided_slice %1 {offsets = [0, 5], sizes = [32, 1], strides = [1, 1]} : vector<32x8xf32> to vector<32x1xf32>
    %67 = vector.broadcast %66 : vector<32x1xf32> to vector<32x128xf32>
    %68 = arith.mulf %65, %67 : vector<32x128xf32>
    %69 = arith.maximumf %59, %68 : vector<32x128xf32>
    %c0_42 = arith.constant 0 : index
    %c48 = arith.constant 48 : index
    %70 = vector.load %arg2[%c0_42, %c48] : memref<32x128xf32, #tpu.memory_space<vmem>>, vector<32x8xf32>
    %c0_43 = arith.constant 0 : index
    %c0_44 = arith.constant 0 : index
    %71 = vector.load %arg5[%c0_43, %c0_44] : memref<8x128xf32, #tpu.memory_space<vmem>>, vector<8x128xf32>
    %cst_45 = arith.constant dense<0.000000e+00> : vector<32x128xf32>
    %72 = tpu.matmul %70, %71, %cst_45 {dimension_numbers = #tpu.dot_dimension_numbers<[1], [0], [0], [1], [0, 0, 1, 1], [], []>} : vector<32x8xf32>, vector<8x128xf32>, vector<32x128xf32> -> vector<32x128xf32>
    %73 = arith.addf %6, %72 : vector<32x128xf32>
    %cst_46 = arith.constant 0.000000e+00 : f32
    %74 = vector.broadcast %cst_46 : f32 to vector<32x128xf32>
    %75 = arith.maximumf %73, %74 : vector<32x128xf32>
    %76 = vector.extract_strided_slice %1 {offsets = [0, 6], sizes = [32, 1], strides = [1, 1]} : vector<32x8xf32> to vector<32x1xf32>
    %77 = vector.broadcast %76 : vector<32x1xf32> to vector<32x128xf32>
    %78 = arith.mulf %75, %77 : vector<32x128xf32>
    %79 = arith.maximumf %69, %78 : vector<32x128xf32>
    %c0_47 = arith.constant 0 : index
    %c56 = arith.constant 56 : index
    %80 = vector.load %arg2[%c0_47, %c56] : memref<32x128xf32, #tpu.memory_space<vmem>>, vector<32x8xf32>
    %c0_48 = arith.constant 0 : index
    %c0_49 = arith.constant 0 : index
    %81 = vector.load %arg5[%c0_48, %c0_49] : memref<8x128xf32, #tpu.memory_space<vmem>>, vector<8x128xf32>
    %cst_50 = arith.constant dense<0.000000e+00> : vector<32x128xf32>
    %82 = tpu.matmul %80, %81, %cst_50 {dimension_numbers = #tpu.dot_dimension_numbers<[1], [0], [0], [1], [0, 0, 1, 1], [], []>} : vector<32x8xf32>, vector<8x128xf32>, vector<32x128xf32> -> vector<32x128xf32>
    %83 = arith.addf %6, %82 : vector<32x128xf32>
    %cst_51 = arith.constant 0.000000e+00 : f32
    %84 = vector.broadcast %cst_51 : f32 to vector<32x128xf32>
    %85 = arith.maximumf %83, %84 : vector<32x128xf32>
    %86 = vector.extract_strided_slice %1 {offsets = [0, 7], sizes = [32, 1], strides = [1, 1]} : vector<32x8xf32> to vector<32x1xf32>
    %87 = vector.broadcast %86 : vector<32x1xf32> to vector<32x128xf32>
    %88 = arith.mulf %85, %87 : vector<32x128xf32>
    %89 = arith.maximumf %79, %88 : vector<32x128xf32>
    %90 = arith.addf %8, %89 : vector<32x128xf32>
    %c0_52 = arith.constant 0 : index
    %c0_53 = arith.constant 0 : index
    %91 = vector.load %arg8[%c0_52, %c0_53] : memref<32x128xf32, #tpu.memory_space<vmem>>, vector<32x128xf32>
    tpu.vector_store %arg8[%c0_52, %c0_53], %90 {strides = array<i32>} : memref<32x128xf32, #tpu.memory_space<vmem>>, vector<32x128xf32>,
    return
  }
  func.func @transform_0(%arg0: i32) -> (i32, i32) {
    %c0_i32 = arith.constant 0 : i32
    %c0_i32_0 = arith.constant 0 : i32
    return %arg0, %c0_i32 : i32, i32
  }
  func.func @transform_1(%arg0: i32) -> (i32, i32) {
    %c0_i32 = arith.constant 0 : i32
    %c0_i32_0 = arith.constant 0 : i32
    return %arg0, %c0_i32 : i32, i32
  }
  func.func @transform_2(%arg0: i32) -> (i32, i32) {
    %c0_i32 = arith.constant 0 : i32
    %c0_i32_0 = arith.constant 0 : i32
    return %arg0, %c0_i32 : i32, i32
  }
  func.func @transform_3(%arg0: i32) -> (i32, i32) {
    %c0_i32 = arith.constant 0 : i32
    %c0_i32_0 = arith.constant 0 : i32
    %c0_i32_1 = arith.constant 0 : i32
    return %c0_i32, %c0_i32_0 : i32, i32
  }
  func.func @transform_4(%arg0: i32) -> (i32, i32) {
    %c0_i32 = arith.constant 0 : i32
    %c0_i32_0 = arith.constant 0 : i32
    %c0_i32_1 = arith.constant 0 : i32
    return %c0_i32, %c0_i32_0 : i32, i32
  }
  func.func @transform_5(%arg0: i32) -> (i32, i32) {
    %c0_i32 = arith.constant 0 : i32
    %c0_i32_0 = arith.constant 0 : i32
    %c0_i32_1 = arith.constant 0 : i32
    return %c0_i32, %c0_i32_0 : i32, i32
  }
  func.func @transform_6(%arg0: i32) -> (i32, i32) {
    %c0_i32 = arith.constant 0 : i32
    %c0_i32_0 = arith.constant 0 : i32
    %c0_i32_1 = arith.constant 0 : i32
    return %c0_i32, %c0_i32_0 : i32, i32
  }
  func.func @transform_7(%arg0: i32) -> (i32, i32) {
    %c0_i32 = arith.constant 0 : i32
    %c0_i32_0 = arith.constant 0 : i32
    return %arg0, %c0_i32 : i32, i32
  }
}

</mosaic_0001>

<llo_original>
// kernel: tpu_custom_call.1
$region0: #{tpu_custom_call.1}
  #allocation0 [shape = 'u32[]', space=smem, size = 0x4, offset = 0x4, fixed_abs, tag = 'smem constant byte address 0x4 - core index']
  #allocation1 [shape = 'u32[144,128]{1,0:T(1,128)}', space=vmem, size = 0x12000, scoped, tag = 'internal scratch']
  %s0 = inlined_call_operand.vmem [shape: f32[64,8], index: 0, kind: input, shape index: {}]
  %s1 = inlined_call_operand.vmem [shape: f32[64,128], index: 1, kind: input, shape index: {}]
  %s2 = inlined_call_operand.vmem [shape: f32[64,8], index: 2, kind: input, shape index: {}]
  %s3 = inlined_call_operand.vmem [shape: f32[8,128], index: 3, kind: input, shape index: {}]
  %s4 = inlined_call_operand.vmem [shape: f32[8,128], index: 4, kind: input, shape index: {}]
  %s5 = inlined_call_operand.vmem [shape: f32[8,128], index: 5, kind: input, shape index: {}]
  %s6 = inlined_call_operand.vmem [shape: f32[1,128], index: 6, kind: input, shape index: {}]
  %s7 = inlined_call_operand.hbm [shape: f32[64,128], index: 7, kind: output, shape index: {}]
  %s8 = sld [smem:[#allocation0]]
  $region61: #{tpu_custom_call.1} parent=0
    _
  %s10 = ssub.s32 1, %s8
  %s11 = scalar_select 0, %s10, %s8
  $region1: #{tpu_custom_call.1} parent=0
    #allocation2 [shape = 'u8[32768]{0}', space=vmem, size = 0x8000, scoped, tag = 'output window, operand 0']
    #allocation3 [shape = 's32[2]{0}', space=sflag, size = 0x8, scoped, tag = 'scoped memory for tpu_custom_call.1']
    %12 = vsyncpa [#allocation3], 0
    %s13 = scalar_lea.sflag [#allocation3], 1
    %14 = vsyncpa %s13, 0
    loop: start=0, step=1, limit=4
    $region2: #{tpu_custom_call.1} parent=1 // loop_pre_header
      _
    $region3: #{tpu_custom_call.1} parent=1 // loop_header
      %s16 = sphi 0, %s20
      %p17 = scmp.ge.s32.totalorder %s16, 4
      %s26 = sphi 0, %s28
      %s29 = sphi 0, %s26
      %s30 = sphi 0, %s29
      %s46 = sphi 0, %s30
      %s52 = sphi 0, %s54
      %s55 = sphi 0, %s52
      %s56 = sphi 0, %s55
      %s72 = sphi 0, %s56
      %s78 = sphi 0, %s80
      %s81 = sphi 0, %s78
      %s82 = sphi 0, %s81
      %s98 = sphi 0, %s82
      %s102 = sphi 0, %s102
      %s104 = sphi 0, %s102
      %s105 = sphi 0, %s104
      %s119 = sphi 0, %s105
      %s123 = sphi 0, %s123
      %s125 = sphi 0, %s123
      %s126 = sphi 0, %s125
      %s140 = sphi 0, %s126
      %s144 = sphi 0, %s144
      %s146 = sphi 0, %s144
      %s147 = sphi 0, %s146
      %s161 = sphi 0, %s147
      %s165 = sphi 0, %s165
      %s167 = sphi 0, %s165
      %s168 = sphi 0, %s167
      %s182 = sphi 0, %s168
      %s188 = sphi 0, %s190
      %s191 = sphi 0, %s188
      %s192 = sphi 0, %s191
      %s208 = sphi 0, %s192
    $region4: #{tpu_custom_call.1} parent=1 // loop_header_branch
      %19 = sbr.rel (%p17) target = $region8
    $region5: #{tpu_custom_call.1} parent=1 // loop_body
      %s21 = ssub.s32 %s16, 1
      %s22 = ssub.s32 %s16, 2
      %s23 = sadd.s32 %s16, 1
      %s24 = ssub.s32 %s16, %s23
      %p25 = scmp.eq.s32.totalorder %s24, 0
      %s27 = sadd.s32 %s26, 1
      %s28 = scalar_select %p25, %s26, %s27
      %p31 = pneg %p25
      %p32 = scmp.eq.s32.totalorder %s16, 1
      %p33 = por %p31, %p32
      %p34 = scmp.ne.s32.totalorder %s26, %s29
      %p35 = scmp.eq.s32.totalorder %s16, 0
      %p36 = por %p34, %p35
      %p37 = scmp.ne.s32.totalorder %s26, %s29
      %p38 = scmp.eq.s32.totalorder %s21, 1
      %p39 = por %p37, %p38
      %p40 = scmp.ne.s32.totalorder %s29, %s30
      %p41 = scmp.eq.s32.totalorder %s21, 0
      %p42 = por %p40, %p41
      %p43 = scmp.ne.s32.totalorder %s29, %s30
      %p44 = scmp.eq.s32.totalorder %s22, 1
      %p45 = por %p43, %p44
      %p47 = scmp.ne.s32.totalorder %s30, %s46
      %p48 = scmp.eq.s32.totalorder %s22, 0
      %p49 = por %p47, %p48
      %s50 = ssub.s32 %s16, %s23
      %p51 = scmp.eq.s32.totalorder %s50, 0
      %s53 = sadd.s32 %s52, 1
      %s54 = scalar_select %p51, %s52, %s53
      %p57 = pneg %p51
      %p58 = scmp.eq.s32.totalorder %s16, 1
      %p59 = por %p57, %p58
      %p60 = scmp.ne.s32.totalorder %s52, %s55
      %p61 = scmp.eq.s32.totalorder %s16, 0
      %p62 = por %p60, %p61
      %p63 = scmp.ne.s32.totalorder %s52, %s55
      %p64 = scmp.eq.s32.totalorder %s21, 1
      %p65 = por %p63, %p64
      %p66 = scmp.ne.s32.totalorder %s55, %s56
      %p67 = scmp.eq.s32.totalorder %s21, 0
      %p68 = por %p66, %p67
      %p69 = scmp.ne.s32.totalorder %s55, %s56
      %p70 = scmp.eq.s32.totalorder %s22, 1
      %p71 = por %p69, %p70
      %p73 = scmp.ne.s32.totalorder %s56, %s72
      %p74 = scmp.eq.s32.totalorder %s22, 0
      %p75 = por %p73, %p74
      %s76 = ssub.s32 %s16, %s23
      %p77 = scmp.eq.s32.totalorder %s76, 0
      %s79 = sadd.s32 %s78, 1
      %s80 = scalar_select %p77, %s78, %s79
      %p83 = pneg %p77
      %p84 = scmp.eq.s32.totalorder %s16, 1
      %p85 = por %p83, %p84
      %p86 = scmp.ne.s32.totalorder %s78, %s81
      %p87 = scmp.eq.s32.totalorder %s16, 0
      %p88 = por %p86, %p87
      %p89 = scmp.ne.s32.totalorder %s78, %s81
      %p90 = scmp.eq.s32.totalorder %s21, 1
      %p91 = por %p89, %p90
      %p92 = scmp.ne.s32.totalorder %s81, %s82
      %p93 = scmp.eq.s32.totalorder %s21, 0
      %p94 = por %p92, %p93
      %p95 = scmp.ne.s32.totalorder %s81, %s82
      %p96 = scmp.eq.s32.totalorder %s22, 1
      %p97 = por %p95, %p96
      %p99 = scmp.ne.s32.totalorder %s82, %s98
      %p100 = scmp.eq.s32.totalorder %s22, 0
      %p101 = por %p99, %p100
      %s103 = sadd.s32 %s102, 1
      %p106 = scmp.eq.s32.totalorder %s16, 1
      %p107 = scmp.ne.s32.totalorder %s102, %s104
      %p108 = scmp.eq.s32.totalorder %s16, 0
      %p109 = por %p107, %p108
      %p110 = scmp.ne.s32.totalorder %s102, %s104
      %p111 = scmp.eq.s32.totalorder %s21, 1
      %p112 = por %p110, %p111
      %p113 = scmp.ne.s32.totalorder %s104, %s105
      %p114 = scmp.eq.s32.totalorder %s21, 0
      %p115 = por %p113, %p114
      %p116 = scmp.ne.s32.totalorder %s104, %s105
      %p117 = scmp.eq.s32.totalorder %s22, 1
      %p118 = por %p116, %p117
      %p120 = scmp.ne.s32.totalorder %s105, %s119
      %p121 = scmp.eq.s32.totalorder %s22, 0
      %p122 = por %p120, %p121
      %s124 = sadd.s32 %s123, 1
      %p127 = scmp.eq.s32.totalorder %s16, 1
      %p128 = scmp.ne.s32.totalorder %s123, %s125
      %p129 = scmp.eq.s32.totalorder %s16, 0
      %p130 = por %p128, %p129
      %p131 = scmp.ne.s32.totalorder %s123, %s125
      %p132 = scmp.eq.s32.totalorder %s21, 1
      %p133 = por %p131, %p132
      %p134 = scmp.ne.s32.totalorder %s125, %s126
      %p135 = scmp.eq.s32.totalorder %s21, 0
      %p136 = por %p134, %p135
      %p137 = scmp.ne.s32.totalorder %s125, %s126
      %p138 = scmp.eq.s32.totalorder %s22, 1
      %p139 = por %p137, %p138
      %p141 = scmp.ne.s32.totalorder %s126, %s140
      %p142 = scmp.eq.s32.totalorder %s22, 0
      %p143 = por %p141, %p142
      %s145 = sadd.s32 %s144, 1
      %p148 = scmp.eq.s32.totalorder %s16, 1
      %p149 = scmp.ne.s32.totalorder %s144, %s146
      %p150 = scmp.eq.s32.totalorder %s16, 0
      %p151 = por %p149, %p150
      %p152 = scmp.ne.s32.totalorder %s144, %s146
      %p153 = scmp.eq.s32.totalorder %s21, 1
      %p154 = por %p152, %p153
      %p155 = scmp.ne.s32.totalorder %s146, %s147
      %p156 = scmp.eq.s32.totalorder %s21, 0
      %p157 = por %p155, %p156
      %p158 = scmp.ne.s32.totalorder %s146, %s147
      %p159 = scmp.eq.s32.totalorder %s22, 1
      %p160 = por %p158, %p159
      %p162 = scmp.ne.s32.totalorder %s147, %s161
      %p163 = scmp.eq.s32.totalorder %s22, 0
      %p164 = por %p162, %p163
      %s166 = sadd.s32 %s165, 1
      %p169 = scmp.eq.s32.totalorder %s16, 1
      %p170 = scmp.ne.s32.totalorder %s165, %s167
      %p171 = scmp.eq.s32.totalorder %s16, 0
      %p172 = por %p170, %p171
      %p173 = scmp.ne.s32.totalorder %s165, %s167
      %p174 = scmp.eq.s32.totalorder %s21, 1
      %p175 = por %p173, %p174
      %p176 = scmp.ne.s32.totalorder %s167, %s168
      %p177 = scmp.eq.s32.totalorder %s21, 0
      %p178 = por %p176, %p177
      %p179 = scmp.ne.s32.totalorder %s167, %s168
      %p180 = scmp.eq.s32.totalorder %s22, 1
      %p181 = por %p179, %p180
      %p183 = scmp.ne.s32.totalorder %s168, %s182
      %p184 = scmp.eq.s32.totalorder %s22, 0
      %p185 = por %p183, %p184
      %s186 = ssub.s32 %s16, %s23
      %p187 = scmp.eq.s32.totalorder %s186, 0
      %s189 = sadd.s32 %s188, 1
      %s190 = scalar_select %p187, %s188, %s189
      %p193 = pneg %p187
      %p194 = scmp.eq.s32.totalorder %s16, 1
      %p195 = por %p193, %p194
      %p196 = scmp.ne.s32.totalorder %s188, %s191
      %p197 = scmp.eq.s32.totalorder %s16, 0
      %p198 = por %p196, %p197
      %p199 = scmp.ne.s32.totalorder %s188, %s191
      %p200 = scmp.eq.s32.totalorder %s21, 1
      %p201 = por %p199, %p200
      %p202 = scmp.ne.s32.totalorder %s191, %s192
      %p203 = scmp.eq.s32.totalorder %s21, 0
      %p204 = por %p202, %p203
      %p205 = scmp.ne.s32.totalorder %s191, %s192
      %p206 = scmp.eq.s32.totalorder %s22, 1
      %p207 = por %p205, %p206
      %p209 = scmp.ne.s32.totalorder %s192, %s208
      %p210 = scmp.eq.s32.totalorder %s22, 0
      %p211 = por %p209, %p210
      %p212 = scmp.le.s32.totalorder 1, %s16
      %p213 = scmp.lt.s32.totalorder %s16, 3
      %p214 = pnand %p212, %p213
      %p215 = pneg %p214
      // Predicated region
      $region9: #{tpu_custom_call.1} parent=5 // pred_check
        _
      $region10: #{tpu_custom_call.1} parent=5 // pred_check_branch
        %217 = sbr.rel (%p214) target = $region12
      $region11: #{tpu_custom_call.1} parent=5 // pred_region
        %s218 = ssub.s32 %s16, 1
        // Predicated region
        $region13: #{tpu_custom_call.1} parent=11 // pred_check
          %p219 = pneg %p115
        $region14: #{tpu_custom_call.1} parent=11 // pred_check_branch
          %221 = sbr.rel (%p219) target = $region16
        $region15: #{tpu_custom_call.1} parent=11 // pred_region
          _
        $region16: #{tpu_custom_call.1} parent=11 // pred_fallthru
          _
        // Predicated region
        $region17: #{tpu_custom_call.1} parent=11 // pred_check
          %p222 = pneg %p136
        $region18: #{tpu_custom_call.1} parent=11 // pred_check_branch
          %224 = sbr.rel (%p222) target = $region20
        $region19: #{tpu_custom_call.1} parent=11 // pred_region
          _
        $region20: #{tpu_custom_call.1} parent=11 // pred_fallthru
          _
        // Predicated region
        $region21: #{tpu_custom_call.1} parent=11 // pred_check
          %p225 = pneg %p157
        $region22: #{tpu_custom_call.1} parent=11 // pred_check_branch
          %227 = sbr.rel (%p225) target = $region24
        $region23: #{tpu_custom_call.1} parent=11 // pred_region
          _
        $region24: #{tpu_custom_call.1} parent=11 // pred_fallthru
          _
        // Predicated region
        $region25: #{tpu_custom_call.1} parent=11 // pred_check
          %p228 = pneg %p178
        $region26: #{tpu_custom_call.1} parent=11 // pred_check_branch
          %230 = sbr.rel (%p228) target = $region28
        $region27: #{tpu_custom_call.1} parent=11 // pred_region
          _
        $region28: #{tpu_custom_call.1} parent=11 // pred_fallthru
          _
      $region12: #{tpu_custom_call.1} parent=5 // pred_fallthru
        _
      %p231 = scmp.lt.s32.totalorder %s16, 2
      // Predicated region
      $region29: #{tpu_custom_call.1} parent=5 // pred_check
        %p232 = pneg %p231
      $region30: #{tpu_custom_call.1} parent=5 // pred_check_branch
        %234 = sbr.rel (%p232) target = $region32
      $region31: #{tpu_custom_call.1} parent=5 // pred_region
        // Predicated region
        $region33: #{tpu_custom_call.1} parent=31 // pred_check
          %p235 = pneg %p36
        $region34: #{tpu_custom_call.1} parent=31 // pred_check_branch
          %237 = sbr.rel (%p235) target = $region36
        $region35: #{tpu_custom_call.1} parent=31 // pred_region
          %s238 = smul.u32 4, %s16
          %p239 = scmp.lt.s32.totalorder %s238, 7
          %s240 = scalar_select %p239, %s238, 7
          %s241 = smul.addr %s240, 8
          %s242 = scalar_lea.vmem %s0, %s241
          %s243 = smul.u32 4, %s16
        $region36: #{tpu_custom_call.1} parent=31 // pred_fallthru
          _
        // Predicated region
        $region37: #{tpu_custom_call.1} parent=31 // pred_check
          %p244 = pneg %p62
        $region38: #{tpu_custom_call.1} parent=31 // pred_check_branch
          %246 = sbr.rel (%p244) target = $region40
        $region39: #{tpu_custom_call.1} parent=31 // pred_region
          %s247 = smul.u32 4, %s16
          %p248 = scmp.lt.s32.totalorder %s247, 7
          %s249 = scalar_select %p248, %s247, 7
          %s250 = smul.addr %s249, 8
          %s251 = scalar_lea.vmem %s1, %s250
          %s252 = smul.u32 4, %s16
        $region40: #{tpu_custom_call.1} parent=31 // pred_fallthru
          _
        // Predicated region
        $region41: #{tpu_custom_call.1} parent=31 // pred_check
          %p253 = pneg %p88
        $region42: #{tpu_custom_call.1} parent=31 // pred_check_branch
          %255 = sbr.rel (%p253) target = $region44
        $region43: #{tpu_custom_call.1} parent=31 // pred_region
          %s256 = smul.u32 4, %s16
          %p257 = scmp.lt.s32.totalorder %s256, 7
          %s258 = scalar_select %p257, %s256, 7
          %s259 = smul.addr %s258, 8
          %s260 = scalar_lea.vmem %s2, %s259
          %s261 = smul.u32 4, %s16
        $region44: #{tpu_custom_call.1} parent=31 // pred_fallthru
          _
      $region32: #{tpu_custom_call.1} parent=5 // pred_fallthru
        _
      %p262 = scmp.le.s32.totalorder 1, %s16
      %p263 = scmp.lt.s32.totalorder %s16, 3
      %p264 = pnand %p262, %p263
      %p265 = pneg %p264
      // Predicated region
      $region45: #{tpu_custom_call.1} parent=5 // pred_check
        _
      $region46: #{tpu_custom_call.1} parent=5 // pred_check_branch
        %267 = sbr.rel (%p264) target = $region48
      $region47: #{tpu_custom_call.1} parent=5 // pred_region
        %s268 = ssub.s32 %s16, 1
        %s269 = smul.u32 4, %s21
        %p270 = scmp.lt.s32.totalorder %s269, 7
        %s271 = scalar_select %p270, %s269, 7
        %s272 = smul.addr %s271, 8
        %s273 = scalar_lea.vmem %s0, %s272
        %p274 = pneg %p42
        %p275 = pneg %p39
        %s276 = smul.u32 4, %s21
        %p277 = scmp.lt.s32.totalorder %s276, 7
        %s278 = scalar_select %p277, %s276, 7
        %s279 = smul.addr %s278, 8
        %s280 = scalar_lea.vmem %s1, %s279
        %p281 = pneg %p68
        %p282 = pneg %p65
        %s283 = smul.u32 4, %s21
        %p284 = scmp.lt.s32.totalorder %s283, 7
        %s285 = scalar_select %p284, %s283, 7
        %s286 = smul.addr %s285, 8
        %s287 = scalar_lea.vmem %s2, %s286
        %p288 = pneg %p94
        %p289 = pneg %p91
        %p290 = pneg %p115
        %p291 = pneg %p112
        %p292 = pneg %p136
        %p293 = pneg %p133
        %p294 = pneg %p157
        %p295 = pneg %p154
        %p296 = pneg %p178
        %p297 = pneg %p175
        %p298 = pneg %p204
        %p299 = pneg %p201
        %s300 = sand.u32 %s191, 1
        %s301 = scalar_lea.sflag [#allocation3], %s300
        %s302 = sand.u32 %s191, 1
        %s303 = smul.addr %s302, 32
        %s304 = scalar_lea.vmem [#allocation2], %s303
        %s305 = smul.u32 4, %s21
        %p306 = scmp.lt.s32.totalorder %s305, 7
        %s307 = scalar_select %p306, %s305, 7
        %s308 = smul.addr %s307, 8
        %s309 = scalar_lea.vmem %s0, %s308
        %s310 = smul.u32 4, %s21
        %s311 = smul.u32 4, %s21
        %p312 = scmp.lt.s32.totalorder %s311, 7
        %s313 = scalar_select %p312, %s311, 7
        %s314 = smul.addr %s313, 8
        %s315 = scalar_lea.vmem %s1, %s314
        %s316 = smul.u32 4, %s21
        %s317 = smul.u32 4, %s21
        %p318 = scmp.lt.s32.totalorder %s317, 7
        %s319 = scalar_select %p318, %s317, 7
        %s320 = smul.addr %s319, 8
        %s321 = scalar_lea.vmem %s2, %s320
        %s322 = smul.u32 4, %s21
        %s323 = smul.u32 4, %s21
        %v324 = vld [vmem:[%s309] sm:$0xff]
        %v325 = vld [vmem:[%s309 + $0x8] sm:$0xff]
        %v326 = vld [vmem:[%s309 + $0x10] sm:$0xff]
        %v327 = vld [vmem:[%s309 + $0x18] sm:$0xff]
        %v328 = vld [vmem:[%s321] sm:$0xff]
        %v329 = vld [vmem:[%s321 + $0x8] sm:$0xff]
        %v330 = vld [vmem:[%s321 + $0x10] sm:$0xff]
        %v331 = vld [vmem:[%s321 + $0x18] sm:$0xff]
        %v332 = vld [vmem:[%s3] sm:$0xff]
        %v333 = vld [vmem:[%s6] sm:$0x1]
        %v335 = vlaneseq
        %v336 = vshrl.u32 %v335, 7
        %v337 = vsub.s32 0, %v336
        %v338 = vrot.slane %v333, %v337
        %vm340 = vcmask 64512
        %v342 = vsel %vm340, %v324, 0
        %v345 = vsel %vm340, %v325, 0
        %v348 = vsel %vm340, %v326, 0
        %v351 = vsel %vm340, %v327, 0
        %353 = vmatprep.subr.mxu0 0.0
        %354 = vmatpush1.msra.mxu0 %v332
        %355 = vmatprep.subr.mxu0 0.0
        %356 = vmatpush1.msra.mxu0 0.0
        %357 = vmatprep.subr.mxu0 0.0
        %358 = vmatpush1.msra.mxu0 0.0
        %359 = vmatprep.subr.mxu0 0.0
        %360 = vmatpush1.msra.mxu0 0.0
        %361 = vmatprep.subr.mxu0 0.0
        %362 = vmatpush1.msra.mxu0 0.0
        %363 = vmatprep.subr.mxu0 0.0
        %364 = vmatpush1.msra.mxu0 0.0
        %365 = vmatprep.subr.mxu0 0.0
        %366 = vmatpush1.msra.mxu0 0.0
        %367 = vmatprep.subr.mxu0 0.0
        %368 = vmatpush1.msra.mxu0 0.0
        %369 = vmatprep.subr.mxu0 0.0
        %370 = vmatpush1.msra.mxu0 0.0
        %371 = vmatprep.subr.mxu0 0.0
        %372 = vmatpush1.msra.mxu0 0.0
        %373 = vmatprep.subr.mxu0 0.0
        %374 = vmatpush1.msra.mxu0 0.0
        %375 = vmatprep.subr.mxu0 0.0
        %376 = vmatpush1.msra.mxu0 0.0
        %377 = vmatprep.subr.mxu0 0.0
        %378 = vmatpush1.msra.mxu0 0.0
        %379 = vmatprep.subr.mxu0 0.0
        %380 = vmatpush1.msra.mxu0 0.0
        %381 = vmatprep.subr.mxu0 0.0
        %382 = vmatpush1.msra.mxu0 0.0
        %383 = vmatprep.subr.mxu0 0.0
        %384 = vmatpush1.msra.mxu0 0.0
        %385 = vmatprep.subr.mxu0 0.0
        %386 = vmatpush1.msra.mxu0 0.0
        %387 = vmatprep.subr.mxu0 0.0
        %388 = vmatpush1.msra.mxu0 0.0
        %389 = vmatprep.subr.mxu0 0.0
        %390 = vmatpush1.msra.mxu0 0.0
        %391 = vmatprep.subr.mxu0 0.0
        %392 = vmatpush1.msra.mxu0 0.0
        %393 = vmatprep.subr.mxu0 0.0
        %394 = vmatpush1.msra.mxu0 0.0
        %395 = vmatprep.subr.mxu0 0.0
        %396 = vmatpush1.msra.mxu0 0.0
        %397 = vmatprep.subr.mxu0 0.0
        %398 = vmatpush1.msra.mxu0 0.0
        %399 = vmatprep.subr.mxu0 0.0
        %400 = vmatpush1.msra.mxu0 0.0
        %401 = vmatprep.subr.mxu0 0.0
        %402 = vmatpush1.msra.mxu0 0.0
        %403 = vmatprep.subr.mxu0 0.0
        %404 = vmatpush1.msra.mxu0 0.0
        %405 = vmatprep.subr.mxu0 0.0
        %406 = vmatpush1.msra.mxu0 0.0
        %407 = vmatprep.subr.mxu0 0.0
        %408 = vmatpush1.msra.mxu0 0.0
        %409 = vmatprep.subr.mxu0 0.0
        %410 = vmatpush1.msra.mxu0 0.0
        %411 = vmatprep.subr.mxu0 0.0
        %412 = vmatpush1.msra.mxu0 0.0
        %413 = vmatprep.subr.mxu0 0.0
        %414 = vmatpush1.msra.mxu0 0.0
        %415 = vmatprep.subr.mxu0 0.0
        %416 = vmatpush1.msra.mxu0 0.0
        %417 = vmatprep.mubr.f32.mxu0 0.0
        %418 = vmatmul.mubr.f32.gmra.mrb[0].mxu0 %v342
        %v419 = vpop.f32.mrb[0].mxu0
        %v420 = vadd.f32 %v338, %v419
        %v421 = vpop.f32.mrb[0].mxu0
        %422 = vmatprep.mubr.f32.mxu0 0.0
        %423 = vmatmul.mubr.f32.gmra.mrb[0].mxu0 %v345
        %v424 = vpop.f32.mrb[0].mxu0
        %v425 = vadd.f32 %v338, %v424
        %v426 = vpop.f32.mrb[0].mxu0
        %427 = vmatprep.mubr.f32.mxu0 0.0
        %428 = vmatmul.mubr.f32.gmra.mrb[0].mxu0 %v348
        %v429 = vpop.f32.mrb[0].mxu0
        %v430 = vadd.f32 %v338, %v429
        %v431 = vpop.f32.mrb[0].mxu0
        %432 = vmatprep.mubr.f32.mxu0 0.0
        %433 = vmatmul.mubr.f32.gmra.mrb[0].mxu0 %v351
        %v434 = vpop.f32.mrb[0].mxu0
        %v435 = vadd.f32 %v338, %v434
        %v436 = vpop.f32.mrb[0].mxu0
        %437 = vdwg.mxu0
        %v438 = vld [vmem:[%s5] sm:$0xff]
        %v439 = vld [vmem:[%s315] sm:$0xff]
        %v440 = vld [vmem:[%s315 + $0x8] sm:$0xff]
        %v441 = vld [vmem:[%s315 + $0x10] sm:$0xff]
        %v442 = vld [vmem:[%s315 + $0x18] sm:$0xff]
        %v443 = vld [vmem:[%s4] sm:$0xff]
        %v445 = vsel %vm340, %v439, 0
        %v448 = vsel %vm340, %v440, 0
        %v451 = vsel %vm340, %v441, 0
        %v454 = vsel %vm340, %v442, 0
        %456 = vmatprep.subr.mxu0 0.0
        %457 = vmatpush1.msra.mxu0 %v443
        %458 = vmatprep.subr.mxu0 0.0
        %459 = vmatpush1.msra.mxu0 0.0
        %460 = vmatprep.subr.mxu0 0.0
        %461 = vmatpush1.msra.mxu0 0.0
        %462 = vmatprep.subr.mxu0 0.0
        %463 = vmatpush1.msra.mxu0 0.0
        %464 = vmatprep.subr.mxu0 0.0
        %465 = vmatpush1.msra.mxu0 0.0
        %466 = vmatprep.subr.mxu0 0.0
        %467 = vmatpush1.msra.mxu0 0.0
        %468 = vmatprep.subr.mxu0 0.0
        %469 = vmatpush1.msra.mxu0 0.0
        %470 = vmatprep.subr.mxu0 0.0
        %471 = vmatpush1.msra.mxu0 0.0
        %472 = vmatprep.subr.mxu0 0.0
        %473 = vmatpush1.msra.mxu0 0.0
        %474 = vmatprep.subr.mxu0 0.0
        %475 = vmatpush1.msra.mxu0 0.0
        %476 = vmatprep.subr.mxu0 0.0
        %477 = vmatpush1.msra.mxu0 0.0
        %478 = vmatprep.subr.mxu0 0.0
        %479 = vmatpush1.msra.mxu0 0.0
        %480 = vmatprep.subr.mxu0 0.0
        %481 = vmatpush1.msra.mxu0 0.0
        %482 = vmatprep.subr.mxu0 0.0
        %483 = vmatpush1.msra.mxu0 0.0
        %484 = vmatprep.subr.mxu0 0.0
        %485 = vmatpush1.msra.mxu0 0.0
        %486 = vmatprep.subr.mxu0 0.0
        %487 = vmatpush1.msra.mxu0 0.0
        %488 = vmatprep.subr.mxu0 0.0
        %489 = vmatpush1.msra.mxu0 0.0
        %490 = vmatprep.subr.mxu0 0.0
        %491 = vmatpush1.msra.mxu0 0.0
        %492 = vmatprep.subr.mxu0 0.0
        %493 = vmatpush1.msra.mxu0 0.0
        %494 = vmatprep.subr.mxu0 0.0
        %495 = vmatpush1.msra.mxu0 0.0
        %496 = vmatprep.subr.mxu0 0.0
        %497 = vmatpush1.msra.mxu0 0.0
        %498 = vmatprep.subr.mxu0 0.0
        %499 = vmatpush1.msra.mxu0 0.0
        %500 = vmatprep.subr.mxu0 0.0
        %501 = vmatpush1.msra.mxu0 0.0
        %502 = vmatprep.subr.mxu0 0.0
        %503 = vmatpush1.msra.mxu0 0.0
        %504 = vmatprep.subr.mxu0 0.0
        %505 = vmatpush1.msra.mxu0 0.0
        %506 = vmatprep.subr.mxu0 0.0
        %507 = vmatpush1.msra.mxu0 0.0
        %508 = vmatprep.subr.mxu0 0.0
        %509 = vmatpush1.msra.mxu0 0.0
        %510 = vmatprep.subr.mxu0 0.0
        %511 = vmatpush1.msra.mxu0 0.0
        %512 = vmatprep.subr.mxu0 0.0
        %513 = vmatpush1.msra.mxu0 0.0
        %514 = vmatprep.subr.mxu0 0.0
        %515 = vmatpush1.msra.mxu0 0.0
        %516 = vmatprep.subr.mxu0 0.0
        %517 = vmatpush1.msra.mxu0 0.0
        %518 = vmatprep.subr.mxu0 0.0
        %519 = vmatpush1.msra.mxu0 0.0
        %520 = vmatprep.mubr.f32.mxu0 0.0
        %521 = vmatmul.mubr.f32.gmra.mrb[0].mxu0 %v445
        %v522 = vpop.f32.mrb[0].mxu0
        %v523 = vadd.f32 0.0, %v522
        %v524 = vpop.f32.mrb[0].mxu0
        %525 = vmatprep.mubr.f32.mxu0 0.0
        %526 = vmatmul.mubr.f32.gmra.mrb[0].mxu0 %v448
        %v527 = vpop.f32.mrb[0].mxu0
        %v528 = vadd.f32 0.0, %v527
        %v529 = vpop.f32.mrb[0].mxu0
        %530 = vmatprep.mubr.f32.mxu0 0.0
        %531 = vmatmul.mubr.f32.gmra.mrb[0].mxu0 %v451
        %v532 = vpop.f32.mrb[0].mxu0
        %v533 = vadd.f32 0.0, %v532
        %v534 = vpop.f32.mrb[0].mxu0
        %535 = vmatprep.mubr.f32.mxu0 0.0
        %536 = vmatmul.mubr.f32.gmra.mrb[0].mxu0 %v454
        %v537 = vpop.f32.mrb[0].mxu0
        %v538 = vadd.f32 0.0, %v537
        %v539 = vpop.f32.mrb[0].mxu0
        %540 = vdwg.mxu0
        %v541 = vadd.f32 %v420, %v523
        %v542 = vadd.f32 %v425, %v528
        %v543 = vadd.f32 %v430, %v533
        %v544 = vadd.f32 %v435, %v538
        %v545 = vmax.f32 %v541, 0.0
        %v546 = vmax.f32 %v542, 0.0
        %v547 = vmax.f32 %v543, 0.0
        %v548 = vmax.f32 %v544, 0.0
        %550 = vset.pattern.permute.xlu0 0
        %551 = vperm.xlu0 %550, %v328
        %v552 = vpop.permute.xlu0 %551
        %555 = vset.pattern.permute.xlu0 0
        %556 = vperm.xlu0 %555, %v329
        %v557 = vpop.permute.xlu0 %556
        %560 = vset.pattern.permute.xlu0 0
        %561 = vperm.xlu0 %560, %v330
        %v562 = vpop.permute.xlu0 %561
        %565 = vset.pattern.permute.xlu0 0
        %566 = vperm.xlu0 %565, %v331
        %v567 = vpop.permute.xlu0 %566
        %v569 = vmul.f32 %v545, %v552
        %v570 = vmul.f32 %v546, %v557
        %v571 = vmul.f32 %v547, %v562
        %v572 = vmul.f32 %v548, %v567
        %v573 = vmax.f32 %v569, 0.0
        %v574 = vmax.f32 %v570, 0.0
        %v575 = vmax.f32 %v571, 0.0
        %v576 = vmax.f32 %v572, 0.0
        %577 = vrot.lane.b32.xlu0 %v439, 120
        %v578 = vpop.permute.xlu0 %577
        %579 = vrot.lane.b32.xlu0 %v440, 120
        %v580 = vpop.permute.xlu0 %579
        %581 = vrot.lane.b32.xlu0 %v441, 120
        %v582 = vpop.permute.xlu0 %581
        %583 = vrot.lane.b32.xlu0 %v442, 120
        %v584 = vpop.permute.xlu0 %583
        %v585 = vsel %vm340, %v578, 0
        %v587 = vsel %vm340, %v580, 0
        %v589 = vsel %vm340, %v582, 0
        %v591 = vsel %vm340, %v584, 0
        %593 = vmatprep.subr.mxu0 0.0
        %594 = vmatpush1.msra.mxu0 %v443
        %595 = vmatprep.subr.mxu0 0.0
        %596 = vmatpush1.msra.mxu0 0.0
        %597 = vmatprep.subr.mxu0 0.0
        %598 = vmatpush1.msra.mxu0 0.0
        %599 = vmatprep.subr.mxu0 0.0
        %600 = vmatpush1.msra.mxu0 0.0
        %601 = vmatprep.subr.mxu0 0.0
        %602 = vmatpush1.msra.mxu0 0.0
        %603 = vmatprep.subr.mxu0 0.0
        %604 = vmatpush1.msra.mxu0 0.0
        %605 = vmatprep.subr.mxu0 0.0
        %606 = vmatpush1.msra.mxu0 0.0
        %607 = vmatprep.subr.mxu0 0.0
        %608 = vmatpush1.msra.mxu0 0.0
        %609 = vmatprep.subr.mxu0 0.0
        %610 = vmatpush1.msra.mxu0 0.0
        %611 = vmatprep.subr.mxu0 0.0
        %612 = vmatpush1.msra.mxu0 0.0
        %613 = vmatprep.subr.mxu0 0.0
        %614 = vmatpush1.msra.mxu0 0.0
        %615 = vmatprep.subr.mxu0 0.0
        %616 = vmatpush1.msra.mxu0 0.0
        %617 = vmatprep.subr.mxu0 0.0
        %618 = vmatpush1.msra.mxu0 0.0
        %619 = vmatprep.subr.mxu0 0.0
        %620 = vmatpush1.msra.mxu0 0.0
        %621 = vmatprep.subr.mxu0 0.0
        %622 = vmatpush1.msra.mxu0 0.0
        %623 = vmatprep.subr.mxu0 0.0
        %624 = vmatpush1.msra.mxu0 0.0
        %625 = vmatprep.subr.mxu0 0.0
        %626 = vmatpush1.msra.mxu0 0.0
        %627 = vmatprep.subr.mxu0 0.0
        %628 = vmatpush1.msra.mxu0 0.0
        %629 = vmatprep.subr.mxu0 0.0
        %630 = vmatpush1.msra.mxu0 0.0
        %631 = vmatprep.subr.mxu0 0.0
        %632 = vmatpush1.msra.mxu0 0.0
        %633 = vmatprep.subr.mxu0 0.0
        %634 = vmatpush1.msra.mxu0 0.0
        %635 = vmatprep.subr.mxu0 0.0
        %636 = vmatpush1.msra.mxu0 0.0
        %637 = vmatprep.subr.mxu0 0.0
        %638 = vmatpush1.msra.mxu0 0.0
        %639 = vmatprep.subr.mxu0 0.0
        %640 = vmatpush1.msra.mxu0 0.0
        %641 = vmatprep.subr.mxu0 0.0
        %642 = vmatpush1.msra.mxu0 0.0
        %643 = vmatprep.subr.mxu0 0.0
        %644 = vmatpush1.msra.mxu0 0.0
        %645 = vmatprep.subr.mxu0 0.0
        %646 = vmatpush1.msra.mxu0 0.0
        %647 = vmatprep.subr.mxu0 0.0
        %648 = vmatpush1.msra.mxu0 0.0
        %649 = vmatprep.subr.mxu0 0.0
        %650 = vmatpush1.msra.mxu0 0.0
        %651 = vmatprep.subr.mxu0 0.0
        %652 = vmatpush1.msra.mxu0 0.0
        %653 = vmatprep.subr.mxu0 0.0
        %654 = vmatpush1.msra.mxu0 0.0
        %655 = vmatprep.subr.mxu0 0.0
        %656 = vmatpush1.msra.mxu0 0.0
        %657 = vmatprep.mubr.f32.mxu0 0.0
        %658 = vmatmul.mubr.f32.gmra.mrb[0].mxu0 %v585
        %v659 = vpop.f32.mrb[0].mxu0
        %v660 = vadd.f32 0.0, %v659
        %v661 = vpop.f32.mrb[0].mxu0
        %662 = vmatprep.mubr.f32.mxu0 0.0
        %663 = vmatmul.mubr.f32.gmra.mrb[0].mxu0 %v587
        %v664 = vpop.f32.mrb[0].mxu0
        %v665 = vadd.f32 0.0, %v664
        %v666 = vpop.f32.mrb[0].mxu0
        %667 = vmatprep.mubr.f32.mxu0 0.0
        %668 = vmatmul.mubr.f32.gmra.mrb[0].mxu0 %v589
        %v669 = vpop.f32.mrb[0].mxu0
        %v670 = vadd.f32 0.0, %v669
        %v671 = vpop.f32.mrb[0].mxu0
        %672 = vmatprep.mubr.f32.mxu0 0.0
        %673 = vmatmul.mubr.f32.gmra.mrb[0].mxu0 %v591
        %v674 = vpop.f32.mrb[0].mxu0
        %v675 = vadd.f32 0.0, %v674
        %v676 = vpop.f32.mrb[0].mxu0
        %677 = vdwg.mxu0
        %v678 = vadd.f32 %v420, %v660
        %v679 = vadd.f32 %v425, %v665
        %v680 = vadd.f32 %v430, %v670
        %v681 = vadd.f32 %v435, %v675
        %v682 = vmax.f32 %v678, 0.0
        %v683 = vmax.f32 %v679, 0.0
        %v684 = vmax.f32 %v680, 0.0
        %v685 = vmax.f32 %v681, 0.0
        %686 = vset.pattern.permute.xlu0 1
        %687 = vperm.xlu0 %686, %v328
        %v688 = vpop.permute.xlu0 %687
        %690 = vset.pattern.permute.xlu0 1
        %691 = vperm.xlu0 %690, %v329
        %v692 = vpop.permute.xlu0 %691
        %694 = vset.pattern.permute.xlu0 1
        %695 = vperm.xlu0 %694, %v330
        %v696 = vpop.permute.xlu0 %695
        %698 = vset.pattern.permute.xlu0 1
        %699 = vperm.xlu0 %698, %v331
        %v700 = vpop.permute.xlu0 %699
        %v702 = vmul.f32 %v682, %v688
        %v703 = vmul.f32 %v683, %v692
        %v704 = vmul.f32 %v684, %v696
        %v705 = vmul.f32 %v685, %v700
        %v706 = vmax.f32 %v573, %v702
        %v707 = vmax.f32 %v574, %v703
        %v708 = vmax.f32 %v575, %v704
        %v709 = vmax.f32 %v576, %v705
        %710 = vrot.lane.b32.xlu0 %v439, 112
        %v711 = vpop.permute.xlu0 %710
        %712 = vrot.lane.b32.xlu0 %v440, 112
        %v713 = vpop.permute.xlu0 %712
        %714 = vrot.lane.b32.xlu0 %v441, 112
        %v715 = vpop.permute.xlu0 %714
        %716 = vrot.lane.b32.xlu0 %v442, 112
        %v717 = vpop.permute.xlu0 %716
        %v718 = vsel %vm340, %v711, 0
        %v720 = vsel %vm340, %v713, 0
        %v722 = vsel %vm340, %v715, 0
        %v724 = vsel %vm340, %v717, 0
        %726 = vmatprep.subr.mxu0 0.0
        %727 = vmatpush1.msra.mxu0 %v443
        %728 = vmatprep.subr.mxu0 0.0
        %729 = vmatpush1.msra.mxu0 0.0
        %730 = vmatprep.subr.mxu0 0.0
        %731 = vmatpush1.msra.mxu0 0.0
        %732 = vmatprep.subr.mxu0 0.0
        %733 = vmatpush1.msra.mxu0 0.0
        %734 = vmatprep.subr.mxu0 0.0
        %735 = vmatpush1.msra.mxu0 0.0
        %736 = vmatprep.subr.mxu0 0.0
        %737 = vmatpush1.msra.mxu0 0.0
        %738 = vmatprep.subr.mxu0 0.0
        %739 = vmatpush1.msra.mxu0 0.0
        %740 = vmatprep.subr.mxu0 0.0
        %741 = vmatpush1.msra.mxu0 0.0
        %742 = vmatprep.subr.mxu0 0.0
        %743 = vmatpush1.msra.mxu0 0.0
        %744 = vmatprep.subr.mxu0 0.0
        %745 = vmatpush1.msra.mxu0 0.0
        %746 = vmatprep.subr.mxu0 0.0
        %747 = vmatpush1.msra.mxu0 0.0
        %748 = vmatprep.subr.mxu0 0.0
        %749 = vmatpush1.msra.mxu0 0.0
        %750 = vmatprep.subr.mxu0 0.0
        %751 = vmatpush1.msra.mxu0 0.0
        %752 = vmatprep.subr.mxu0 0.0
        %753 = vmatpush1.msra.mxu0 0.0
        %754 = vmatprep.subr.mxu0 0.0
        %755 = vmatpush1.msra.mxu0 0.0
        %756 = vmatprep.subr.mxu0 0.0
        %757 = vmatpush1.msra.mxu0 0.0
        %758 = vmatprep.subr.mxu0 0.0
        %759 = vmatpush1.msra.mxu0 0.0
        %760 = vmatprep.subr.mxu0 0.0
        %761 = vmatpush1.msra.mxu0 0.0
        %762 = vmatprep.subr.mxu0 0.0
        %763 = vmatpush1.msra.mxu0 0.0
        %764 = vmatprep.subr.mxu0 0.0
        %765 = vmatpush1.msra.mxu0 0.0
        %766 = vmatprep.subr.mxu0 0.0
        %767 = vmatpush1.msra.mxu0 0.0
        %768 = vmatprep.subr.mxu0 0.0
        %769 = vmatpush1.msra.mxu0 0.0
        %770 = vmatprep.subr.mxu0 0.0
        %771 = vmatpush1.msra.mxu0 0.0
        %772 = vmatprep.subr.mxu0 0.0
        %773 = vmatpush1.msra.mxu0 0.0
        %774 = vmatprep.subr.mxu0 0.0
        %775 = vmatpush1.msra.mxu0 0.0
        %776 = vmatprep.subr.mxu0 0.0
        %777 = vmatpush1.msra.mxu0 0.0
        %778 = vmatprep.subr.mxu0 0.0
        %779 = vmatpush1.msra.mxu0 0.0
        %780 = vmatprep.subr.mxu0 0.0
        %781 = vmatpush1.msra.mxu0 0.0
        %782 = vmatprep.subr.mxu0 0.0
        %783 = vmatpush1.msra.mxu0 0.0
        %784 = vmatprep.subr.mxu0 0.0
        %785 = vmatpush1.msra.mxu0 0.0
        %786 = vmatprep.subr.mxu0 0.0
        %787 = vmatpush1.msra.mxu0 0.0
        %788 = vmatprep.subr.mxu0 0.0
        %789 = vmatpush1.msra.mxu0 0.0
        %790 = vmatprep.mubr.f32.mxu0 0.0
        %791 = vmatmul.mubr.f32.gmra.mrb[0].mxu0 %v718
        %v792 = vpop.f32.mrb[0].mxu0
        %v793 = vadd.f32 0.0, %v792
        %v794 = vpop.f32.mrb[0].mxu0
        %795 = vmatprep.mubr.f32.mxu0 0.0
        %796 = vmatmul.mubr.f32.gmra.mrb[0].mxu0 %v720
        %v797 = vpop.f32.mrb[0].mxu0
        %v798 = vadd.f32 0.0, %v797
        %v799 = vpop.f32.mrb[0].mxu0
        %800 = vmatprep.mubr.f32.mxu0 0.0
        %801 = vmatmul.mubr.f32.gmra.mrb[0].mxu0 %v722
        %v802 = vpop.f32.mrb[0].mxu0
        %v803 = vadd.f32 0.0, %v802
        %v804 = vpop.f32.mrb[0].mxu0
        %805 = vmatprep.mubr.f32.mxu0 0.0
        %806 = vmatmul.mubr.f32.gmra.mrb[0].mxu0 %v724
        %v807 = vpop.f32.mrb[0].mxu0
        %v808 = vadd.f32 0.0, %v807
        %v809 = vpop.f32.mrb[0].mxu0
        %810 = vdwg.mxu0
        %v811 = vadd.f32 %v420, %v793
        %v812 = vadd.f32 %v425, %v798
        %v813 = vadd.f32 %v430, %v803
        %v814 = vadd.f32 %v435, %v808
        %v815 = vmax.f32 %v811, 0.0
        %v816 = vmax.f32 %v812, 0.0
        %v817 = vmax.f32 %v813, 0.0
        %v818 = vmax.f32 %v814, 0.0
        %819 = vset.pattern.permute.xlu0 2
        %820 = vperm.xlu0 %819, %v328
        %v821 = vpop.permute.xlu0 %820
        %823 = vset.pattern.permute.xlu0 2
        %824 = vperm.xlu0 %823, %v329
        %v825 = vpop.permute.xlu0 %824
        %827 = vset.pattern.permute.xlu0 2
        %828 = vperm.xlu0 %827, %v330
        %v829 = vpop.permute.xlu0 %828
        %831 = vset.pattern.permute.xlu0 2
        %832 = vperm.xlu0 %831, %v331
        %v833 = vpop.permute.xlu0 %832
        %v835 = vmul.f32 %v815, %v821
        %v836 = vmul.f32 %v816, %v825
        %v837 = vmul.f32 %v817, %v829
        %v838 = vmul.f32 %v818, %v833
        %v839 = vmax.f32 %v706, %v835
        %v840 = vmax.f32 %v707, %v836
        %v841 = vmax.f32 %v708, %v837
        %v842 = vmax.f32 %v709, %v838
        %843 = vrot.lane.b32.xlu0 %v439, 104
        %v844 = vpop.permute.xlu0 %843
        %845 = vrot.lane.b32.xlu0 %v440, 104
        %v846 = vpop.permute.xlu0 %845
        %847 = vrot.lane.b32.xlu0 %v441, 104
        %v848 = vpop.permute.xlu0 %847
        %849 = vrot.lane.b32.xlu0 %v442, 104
        %v850 = vpop.permute.xlu0 %849
        %v851 = vsel %vm340, %v844, 0
        %v853 = vsel %vm340, %v846, 0
        %v855 = vsel %vm340, %v848, 0
        %v857 = vsel %vm340, %v850, 0
        %859 = vmatprep.subr.mxu0 0.0
        %860 = vmatpush1.msra.mxu0 %v443
        %861 = vmatprep.subr.mxu0 0.0
        %862 = vmatpush1.msra.mxu0 0.0
        %863 = vmatprep.subr.mxu0 0.0
        %864 = vmatpush1.msra.mxu0 0.0
        %865 = vmatprep.subr.mxu0 0.0
        %866 = vmatpush1.msra.mxu0 0.0
        %867 = vmatprep.subr.mxu0 0.0
        %868 = vmatpush1.msra.mxu0 0.0
        %869 = vmatprep.subr.mxu0 0.0
        %870 = vmatpush1.msra.mxu0 0.0
        %871 = vmatprep.subr.mxu0 0.0
        %872 = vmatpush1.msra.mxu0 0.0
        %873 = vmatprep.subr.mxu0 0.0
        %874 = vmatpush1.msra.mxu0 0.0
        %875 = vmatprep.subr.mxu0 0.0
        %876 = vmatpush1.msra.mxu0 0.0
        %877 = vmatprep.subr.mxu0 0.0
        %878 = vmatpush1.msra.mxu0 0.0
        %879 = vmatprep.subr.mxu0 0.0
        %880 = vmatpush1.msra.mxu0 0.0
        %881 = vmatprep.subr.mxu0 0.0
        %882 = vmatpush1.msra.mxu0 0.0
        %883 = vmatprep.subr.mxu0 0.0
        %884 = vmatpush1.msra.mxu0 0.0
        %885 = vmatprep.subr.mxu0 0.0
        %886 = vmatpush1.msra.mxu0 0.0
        %887 = vmatprep.subr.mxu0 0.0
        %888 = vmatpush1.msra.mxu0 0.0
        %889 = vmatprep.subr.mxu0 0.0
        %890 = vmatpush1.msra.mxu0 0.0
        %891 = vmatprep.subr.mxu0 0.0
        %892 = vmatpush1.msra.mxu0 0.0
        %893 = vmatprep.subr.mxu0 0.0
        %894 = vmatpush1.msra.mxu0 0.0
        %895 = vmatprep.subr.mxu0 0.0
        %896 = vmatpush1.msra.mxu0 0.0
        %897 = vmatprep.subr.mxu0 0.0
        %898 = vmatpush1.msra.mxu0 0.0
        %899 = vmatprep.subr.mxu0 0.0
        %900 = vmatpush1.msra.mxu0 0.0
        %901 = vmatprep.subr.mxu0 0.0
        %902 = vmatpush1.msra.mxu0 0.0
        %903 = vmatprep.subr.mxu0 0.0
        %904 = vmatpush1.msra.mxu0 0.0
        %905 = vmatprep.subr.mxu0 0.0
        %906 = vmatpush1.msra.mxu0 0.0
        %907 = vmatprep.subr.mxu0 0.0
        %908 = vmatpush1.msra.mxu0 0.0
        %909 = vmatprep.subr.mxu0 0.0
        %910 = vmatpush1.msra.mxu0 0.0
        %911 = vmatprep.subr.mxu0 0.0
        %912 = vmatpush1.msra.mxu0 0.0
        %913 = vmatprep.subr.mxu0 0.0
        %914 = vmatpush1.msra.mxu0 0.0
        %915 = vmatprep.subr.mxu0 0.0
        %916 = vmatpush1.msra.mxu0 0.0
        %917 = vmatprep.subr.mxu0 0.0
        %918 = vmatpush1.msra.mxu0 0.0
        %919 = vmatprep.subr.mxu0 0.0
        %920 = vmatpush1.msra.mxu0 0.0
        %921 = vmatprep.subr.mxu0 0.0
        %922 = vmatpush1.msra.mxu0 0.0
        %923 = vmatprep.mubr.f32.mxu0 0.0
        %924 = vmatmul.mubr.f32.gmra.mrb[0].mxu0 %v851
        %v925 = vpop.f32.mrb[0].mxu0
        %v926 = vadd.f32 0.0, %v925
        %v927 = vpop.f32.mrb[0].mxu0
        %928 = vmatprep.mubr.f32.mxu0 0.0
        %929 = vmatmul.mubr.f32.gmra.mrb[0].mxu0 %v853
        %v930 = vpop.f32.mrb[0].mxu0
        %v931 = vadd.f32 0.0, %v930
        %v932 = vpop.f32.mrb[0].mxu0
        %933 = vmatprep.mubr.f32.mxu0 0.0
        %934 = vmatmul.mubr.f32.gmra.mrb[0].mxu0 %v855
        %v935 = vpop.f32.mrb[0].mxu0
        %v936 = vadd.f32 0.0, %v935
        %v937 = vpop.f32.mrb[0].mxu0
        %938 = vmatprep.mubr.f32.mxu0 0.0
        %939 = vmatmul.mubr.f32.gmra.mrb[0].mxu0 %v857
        %v940 = vpop.f32.mrb[0].mxu0
        %v941 = vadd.f32 0.0, %v940
        %v942 = vpop.f32.mrb[0].mxu0
        %943 = vdwg.mxu0
        %v944 = vadd.f32 %v420, %v926
        %v945 = vadd.f32 %v425, %v931
        %v946 = vadd.f32 %v430, %v936
        %v947 = vadd.f32 %v435, %v941
        %v948 = vmax.f32 %v944, 0.0
        %v949 = vmax.f32 %v945, 0.0
        %v950 = vmax.f32 %v946, 0.0
        %v951 = vmax.f32 %v947, 0.0
        %952 = vset.pattern.permute.xlu0 3
        %953 = vperm.xlu0 %952, %v328
        %v954 = vpop.permute.xlu0 %953
        %956 = vset.pattern.permute.xlu0 3
        %957 = vperm.xlu0 %956, %v329
        %v958 = vpop.permute.xlu0 %957
        %960 = vset.pattern.permute.xlu0 3
        %961 = vperm.xlu0 %960, %v330
        %v962 = vpop.permute.xlu0 %961
        %964 = vset.pattern.permute.xlu0 3
        %965 = vperm.xlu0 %964, %v331
        %v966 = vpop.permute.xlu0 %965
        %v968 = vmul.f32 %v948, %v954
        %v969 = vmul.f32 %v949, %v958
        %v970 = vmul.f32 %v950, %v962
        %v971 = vmul.f32 %v951, %v966
        %v972 = vmax.f32 %v839, %v968
        %v973 = vmax.f32 %v840, %v969
        %v974 = vmax.f32 %v841, %v970
        %v975 = vmax.f32 %v842, %v971
        %976 = vrot.lane.b32.xlu0 %v439, 96
        %v977 = vpop.permute.xlu0 %976
        %978 = vrot.lane.b32.xlu0 %v440, 96
        %v979 = vpop.permute.xlu0 %978
        %980 = vrot.lane.b32.xlu0 %v441, 96
        %v981 = vpop.permute.xlu0 %980
        %982 = vrot.lane.b32.xlu0 %v442, 96
        %v983 = vpop.permute.xlu0 %982
        %v984 = vsel %vm340, %v977, 0
        %v986 = vsel %vm340, %v979, 0
        %v988 = vsel %vm340, %v981, 0
        %v990 = vsel %vm340, %v983, 0
        %992 = vmatprep.subr.mxu0 0.0
        %993 = vmatpush1.msra.mxu0 %v443
        %994 = vmatprep.subr.mxu0 0.0
        %995 = vmatpush1.msra.mxu0 0.0
        %996 = vmatprep.subr.mxu0 0.0
        %997 = vmatpush1.msra.mxu0 0.0
        %998 = vmatprep.subr.mxu0 0.0
        %999 = vmatpush1.msra.mxu0 0.0
        %1000 = vmatprep.subr.mxu0 0.0
        %1001 = vmatpush1.msra.mxu0 0.0
        %1002 = vmatprep.subr.mxu0 0.0
        %1003 = vmatpush1.msra.mxu0 0.0
        %1004 = vmatprep.subr.mxu0 0.0
        %1005 = vmatpush1.msra.mxu0 0.0
        %1006 = vmatprep.subr.mxu0 0.0
        %1007 = vmatpush1.msra.mxu0 0.0
        %1008 = vmatprep.subr.mxu0 0.0
        %1009 = vmatpush1.msra.mxu0 0.0
        %1010 = vmatprep.subr.mxu0 0.0
        %1011 = vmatpush1.msra.mxu0 0.0
        %1012 = vmatprep.subr.mxu0 0.0
        %1013 = vmatpush1.msra.mxu0 0.0
        %1014 = vmatprep.subr.mxu0 0.0
        %1015 = vmatpush1.msra.mxu0 0.0
        %1016 = vmatprep.subr.mxu0 0.0
        %1017 = vmatpush1.msra.mxu0 0.0
        %1018 = vmatprep.subr.mxu0 0.0
        %1019 = vmatpush1.msra.mxu0 0.0
        %1020 = vmatprep.subr.mxu0 0.0
        %1021 = vmatpush1.msra.mxu0 0.0
        %1022 = vmatprep.subr.mxu0 0.0
        %1023 = vmatpush1.msra.mxu0 0.0
        %1024 = vmatprep.subr.mxu0 0.0
        %1025 = vmatpush1.msra.mxu0 0.0
        %1026 = vmatprep.subr.mxu0 0.0
        %1027 = vmatpush1.msra.mxu0 0.0
        %1028 = vmatprep.subr.mxu0 0.0
        %1029 = vmatpush1.msra.mxu0 0.0
        %1030 = vmatprep.subr.mxu0 0.0
        %1031 = vmatpush1.msra.mxu0 0.0
        %1032 = vmatprep.subr.mxu0 0.0
        %1033 = vmatpush1.msra.mxu0 0.0
        %1034 = vmatprep.subr.mxu0 0.0
        %1035 = vmatpush1.msra.mxu0 0.0
        %1036 = vmatprep.subr.mxu0 0.0
        %1037 = vmatpush1.msra.mxu0 0.0
        %1038 = vmatprep.subr.mxu0 0.0
        %1039 = vmatpush1.msra.mxu0 0.0
        %1040 = vmatprep.subr.mxu0 0.0
        %1041 = vmatpush1.msra.mxu0 0.0
        %1042 = vmatprep.subr.mxu0 0.0
        %1043 = vmatpush1.msra.mxu0 0.0
        %1044 = vmatprep.subr.mxu0 0.0
        %1045 = vmatpush1.msra.mxu0 0.0
        %1046 = vmatprep.subr.mxu0 0.0
        %1047 = vmatpush1.msra.mxu0 0.0
        %1048 = vmatprep.subr.mxu0 0.0
        %1049 = vmatpush1.msra.mxu0 0.0
        %1050 = vmatprep.subr.mxu0 0.0
        %1051 = vmatpush1.msra.mxu0 0.0
        %1052 = vmatprep.subr.mxu0 0.0
        %1053 = vmatpush1.msra.mxu0 0.0
        %1054 = vmatprep.subr.mxu0 0.0
        %1055 = vmatpush1.msra.mxu0 0.0
        %1056 = vmatprep.mubr.f32.mxu0 0.0
        %1057 = vmatmul.mubr.f32.gmra.mrb[0].mxu0 %v984
        %v1058 = vpop.f32.mrb[0].mxu0
        %v1059 = vadd.f32 0.0, %v1058
        %v1060 = vpop.f32.mrb[0].mxu0
        %1061 = vmatprep.mubr.f32.mxu0 0.0
        %1062 = vmatmul.mubr.f32.gmra.mrb[0].mxu0 %v986
        %v1063 = vpop.f32.mrb[0].mxu0
        %v1064 = vadd.f32 0.0, %v1063
        %v1065 = vpop.f32.mrb[0].mxu0
        %1066 = vmatprep.mubr.f32.mxu0 0.0
        %1067 = vmatmul.mubr.f32.gmra.mrb[0].mxu0 %v988
        %v1068 = vpop.f32.mrb[0].mxu0
        %v1069 = vadd.f32 0.0, %v1068
        %v1070 = vpop.f32.mrb[0].mxu0
        %1071 = vmatprep.mubr.f32.mxu0 0.0
        %1072 = vmatmul.mubr.f32.gmra.mrb[0].mxu0 %v990
        %v1073 = vpop.f32.mrb[0].mxu0
        %v1074 = vadd.f32 0.0, %v1073
        %v1075 = vpop.f32.mrb[0].mxu0
        %1076 = vdwg.mxu0
        %v1077 = vadd.f32 %v420, %v1059
        %v1078 = vadd.f32 %v425, %v1064
        %v1079 = vadd.f32 %v430, %v1069
        %v1080 = vadd.f32 %v435, %v1074
        %v1081 = vmax.f32 %v1077, 0.0
        %v1082 = vmax.f32 %v1078, 0.0
        %v1083 = vmax.f32 %v1079, 0.0
        %v1084 = vmax.f32 %v1080, 0.0
        %1085 = vset.pattern.permute.xlu0 4
        %1086 = vperm.xlu0 %1085, %v328
        %v1087 = vpop.permute.xlu0 %1086
        %1089 = vset.pattern.permute.xlu0 4
        %1090 = vperm.xlu0 %1089, %v329
        %v1091 = vpop.permute.xlu0 %1090
        %1093 = vset.pattern.permute.xlu0 4
        %1094 = vperm.xlu0 %1093, %v330
        %v1095 = vpop.permute.xlu0 %1094
        %1097 = vset.pattern.permute.xlu0 4
        %1098 = vperm.xlu0 %1097, %v331
        %v1099 = vpop.permute.xlu0 %1098
        %v1101 = vmul.f32 %v1081, %v1087
        %v1102 = vmul.f32 %v1082, %v1091
        %v1103 = vmul.f32 %v1083, %v1095
        %v1104 = vmul.f32 %v1084, %v1099
        %v1105 = vmax.f32 %v972, %v1101
        %v1106 = vmax.f32 %v973, %v1102
        %v1107 = vmax.f32 %v974, %v1103
        %v1108 = vmax.f32 %v975, %v1104
        %1109 = vrot.lane.b32.xlu0 %v439, 88
        %v1110 = vpop.permute.xlu0 %1109
        %1111 = vrot.lane.b32.xlu0 %v440, 88
        %v1112 = vpop.permute.xlu0 %1111
        %1113 = vrot.lane.b32.xlu0 %v441, 88
        %v1114 = vpop.permute.xlu0 %1113
        %1115 = vrot.lane.b32.xlu0 %v442, 88
        %v1116 = vpop.permute.xlu0 %1115
        %v1117 = vsel %vm340, %v1110, 0
        %v1119 = vsel %vm340, %v1112, 0
        %v1121 = vsel %vm340, %v1114, 0
        %v1123 = vsel %vm340, %v1116, 0
        %1125 = vmatprep.subr.mxu0 0.0
        %1126 = vmatpush1.msra.mxu0 %v443
        %1127 = vmatprep.subr.mxu0 0.0
        %1128 = vmatpush1.msra.mxu0 0.0
        %1129 = vmatprep.subr.mxu0 0.0
        %1130 = vmatpush1.msra.mxu0 0.0
        %1131 = vmatprep.subr.mxu0 0.0
        %1132 = vmatpush1.msra.mxu0 0.0
        %1133 = vmatprep.subr.mxu0 0.0
        %1134 = vmatpush1.msra.mxu0 0.0
        %1135 = vmatprep.subr.mxu0 0.0
        %1136 = vmatpush1.msra.mxu0 0.0
        %1137 = vmatprep.subr.mxu0 0.0
        %1138 = vmatpush1.msra.mxu0 0.0
        %1139 = vmatprep.subr.mxu0 0.0
        %1140 = vmatpush1.msra.mxu0 0.0
        %1141 = vmatprep.subr.mxu0 0.0
        %1142 = vmatpush1.msra.mxu0 0.0
        %1143 = vmatprep.subr.mxu0 0.0
        %1144 = vmatpush1.msra.mxu0 0.0
        %1145 = vmatprep.subr.mxu0 0.0
        %1146 = vmatpush1.msra.mxu0 0.0
        %1147 = vmatprep.subr.mxu0 0.0
        %1148 = vmatpush1.msra.mxu0 0.0
        %1149 = vmatprep.subr.mxu0 0.0
        %1150 = vmatpush1.msra.mxu0 0.0
        %1151 = vmatprep.subr.mxu0 0.0
        %1152 = vmatpush1.msra.mxu0 0.0
        %1153 = vmatprep.subr.mxu0 0.0
        %1154 = vmatpush1.msra.mxu0 0.0
        %1155 = vmatprep.subr.mxu0 0.0
        %1156 = vmatpush1.msra.mxu0 0.0
        %1157 = vmatprep.subr.mxu0 0.0
        %1158 = vmatpush1.msra.mxu0 0.0
        %1159 = vmatprep.subr.mxu0 0.0
        %1160 = vmatpush1.msra.mxu0 0.0
        %1161 = vmatprep.subr.mxu0 0.0
        %1162 = vmatpush1.msra.mxu0 0.0
        %1163 = vmatprep.subr.mxu0 0.0
        %1164 = vmatpush1.msra.mxu0 0.0
        %1165 = vmatprep.subr.mxu0 0.0
        %1166 = vmatpush1.msra.mxu0 0.0
        %1167 = vmatprep.subr.mxu0 0.0
        %1168 = vmatpush1.msra.mxu0 0.0
        %1169 = vmatprep.subr.mxu0 0.0
        %1170 = vmatpush1.msra.mxu0 0.0
        %1171 = vmatprep.subr.mxu0 0.0
        %1172 = vmatpush1.msra.mxu0 0.0
        %1173 = vmatprep.subr.mxu0 0.0
        %1174 = vmatpush1.msra.mxu0 0.0
        %1175 = vmatprep.subr.mxu0 0.0
        %1176 = vmatpush1.msra.mxu0 0.0
        %1177 = vmatprep.subr.mxu0 0.0
        %1178 = vmatpush1.msra.mxu0 0.0
        %1179 = vmatprep.subr.mxu0 0.0
        %1180 = vmatpush1.msra.mxu0 0.0
        %1181 = vmatprep.subr.mxu0 0.0
        %1182 = vmatpush1.msra.mxu0 0.0
        %1183 = vmatprep.subr.mxu0 0.0
        %1184 = vmatpush1.msra.mxu0 0.0
        %1185 = vmatprep.subr.mxu0 0.0
        %1186 = vmatpush1.msra.mxu0 0.0
        %1187 = vmatprep.subr.mxu0 0.0
        %1188 = vmatpush1.msra.mxu0 0.0
        %1189 = vmatprep.mubr.f32.mxu0 0.0
        %1190 = vmatmul.mubr.f32.gmra.mrb[0].mxu0 %v1117
        %v1191 = vpop.f32.mrb[0].mxu0
        %v1192 = vadd.f32 0.0, %v1191
        %v1193 = vpop.f32.mrb[0].mxu0
        %1194 = vmatprep.mubr.f32.mxu0 0.0
        %1195 = vmatmul.mubr.f32.gmra.mrb[0].mxu0 %v1119
        %v1196 = vpop.f32.mrb[0].mxu0
        %v1197 = vadd.f32 0.0, %v1196
        %v1198 = vpop.f32.mrb[0].mxu0
        %1199 = vmatprep.mubr.f32.mxu0 0.0
        %1200 = vmatmul.mubr.f32.gmra.mrb[0].mxu0 %v1121
        %v1201 = vpop.f32.mrb[0].mxu0
        %v1202 = vadd.f32 0.0, %v1201
        %v1203 = vpop.f32.mrb[0].mxu0
        %1204 = vmatprep.mubr.f32.mxu0 0.0
        %1205 = vmatmul.mubr.f32.gmra.mrb[0].mxu0 %v1123
        %v1206 = vpop.f32.mrb[0].mxu0
        %v1207 = vadd.f32 0.0, %v1206
        %v1208 = vpop.f32.mrb[0].mxu0
        %1209 = vdwg.mxu0
        %v1210 = vadd.f32 %v420, %v1192
        %v1211 = vadd.f32 %v425, %v1197
        %v1212 = vadd.f32 %v430, %v1202
        %v1213 = vadd.f32 %v435, %v1207
        %v1214 = vmax.f32 %v1210, 0.0
        %v1215 = vmax.f32 %v1211, 0.0
        %v1216 = vmax.f32 %v1212, 0.0
        %v1217 = vmax.f32 %v1213, 0.0
        %1218 = vset.pattern.permute.xlu0 5
        %1219 = vperm.xlu0 %1218, %v328
        %v1220 = vpop.permute.xlu0 %1219
        %1222 = vset.pattern.permute.xlu0 5
        %1223 = vperm.xlu0 %1222, %v329
        %v1224 = vpop.permute.xlu0 %1223
        %1226 = vset.pattern.permute.xlu0 5
        %1227 = vperm.xlu0 %1226, %v330
        %v1228 = vpop.permute.xlu0 %1227
        %1230 = vset.pattern.permute.xlu0 5
        %1231 = vperm.xlu0 %1230, %v331
        %v1232 = vpop.permute.xlu0 %1231
        %v1234 = vmul.f32 %v1214, %v1220
        %v1235 = vmul.f32 %v1215, %v1224
        %v1236 = vmul.f32 %v1216, %v1228
        %v1237 = vmul.f32 %v1217, %v1232
        %v1238 = vmax.f32 %v1105, %v1234
        %v1239 = vmax.f32 %v1106, %v1235
        %v1240 = vmax.f32 %v1107, %v1236
        %v1241 = vmax.f32 %v1108, %v1237
        %1242 = vrot.lane.b32.xlu0 %v439, 80
        %v1243 = vpop.permute.xlu0 %1242
        %1244 = vrot.lane.b32.xlu0 %v440, 80
        %v1245 = vpop.permute.xlu0 %1244
        %1246 = vrot.lane.b32.xlu0 %v441, 80
        %v1247 = vpop.permute.xlu0 %1246
        %1248 = vrot.lane.b32.xlu0 %v442, 80
        %v1249 = vpop.permute.xlu0 %1248
        %v1250 = vsel %vm340, %v1243, 0
        %v1252 = vsel %vm340, %v1245, 0
        %v1254 = vsel %vm340, %v1247, 0
        %v1256 = vsel %vm340, %v1249, 0
        %1258 = vmatprep.subr.mxu0 0.0
        %1259 = vmatpush1.msra.mxu0 %v443
        %1260 = vmatprep.subr.mxu0 0.0
        %1261 = vmatpush1.msra.mxu0 0.0
        %1262 = vmatprep.subr.mxu0 0.0
        %1263 = vmatpush1.msra.mxu0 0.0
        %1264 = vmatprep.subr.mxu0 0.0
        %1265 = vmatpush1.msra.mxu0 0.0
        %1266 = vmatprep.subr.mxu0 0.0
        %1267 = vmatpush1.msra.mxu0 0.0
        %1268 = vmatprep.subr.mxu0 0.0
        %1269 = vmatpush1.msra.mxu0 0.0
        %1270 = vmatprep.subr.mxu0 0.0
        %1271 = vmatpush1.msra.mxu0 0.0
        %1272 = vmatprep.subr.mxu0 0.0
        %1273 = vmatpush1.msra.mxu0 0.0
        %1274 = vmatprep.subr.mxu0 0.0
        %1275 = vmatpush1.msra.mxu0 0.0
        %1276 = vmatprep.subr.mxu0 0.0
        %1277 = vmatpush1.msra.mxu0 0.0
        %1278 = vmatprep.subr.mxu0 0.0
        %1279 = vmatpush1.msra.mxu0 0.0
        %1280 = vmatprep.subr.mxu0 0.0
        %1281 = vmatpush1.msra.mxu0 0.0
        %1282 = vmatprep.subr.mxu0 0.0
        %1283 = vmatpush1.msra.mxu0 0.0
        %1284 = vmatprep.subr.mxu0 0.0
        %1285 = vmatpush1.msra.mxu0 0.0
        %1286 = vmatprep.subr.mxu0 0.0
        %1287 = vmatpush1.msra.mxu0 0.0
        %1288 = vmatprep.subr.mxu0 0.0
        %1289 = vmatpush1.msra.mxu0 0.0
        %1290 = vmatprep.subr.mxu0 0.0
        %1291 = vmatpush1.msra.mxu0 0.0
        %1292 = vmatprep.subr.mxu0 0.0
        %1293 = vmatpush1.msra.mxu0 0.0
        %1294 = vmatprep.subr.mxu0 0.0
        %1295 = vmatpush1.msra.mxu0 0.0
        %1296 = vmatprep.subr.mxu0 0.0
        %1297 = vmatpush1.msra.mxu0 0.0
        %1298 = vmatprep.subr.mxu0 0.0
        %1299 = vmatpush1.msra.mxu0 0.0
        %1300 = vmatprep.subr.mxu0 0.0
        %1301 = vmatpush1.msra.mxu0 0.0
        %1302 = vmatprep.subr.mxu0 0.0
        %1303 = vmatpush1.msra.mxu0 0.0
        %1304 = vmatprep.subr.mxu0 0.0
        %1305 = vmatpush1.msra.mxu0 0.0
        %1306 = vmatprep.subr.mxu0 0.0
        %1307 = vmatpush1.msra.mxu0 0.0
        %1308 = vmatprep.subr.mxu0 0.0
        %1309 = vmatpush1.msra.mxu0 0.0
        %1310 = vmatprep.subr.mxu0 0.0
        %1311 = vmatpush1.msra.mxu0 0.0
        %1312 = vmatprep.subr.mxu0 0.0
        %1313 = vmatpush1.msra.mxu0 0.0
        %1314 = vmatprep.subr.mxu0 0.0
        %1315 = vmatpush1.msra.mxu0 0.0
        %1316 = vmatprep.subr.mxu0 0.0
        %1317 = vmatpush1.msra.mxu0 0.0
        %1318 = vmatprep.subr.mxu0 0.0
        %1319 = vmatpush1.msra.mxu0 0.0
        %1320 = vmatprep.subr.mxu0 0.0
        %1321 = vmatpush1.msra.mxu0 0.0
        %1322 = vmatprep.mubr.f32.mxu0 0.0
        %1323 = vmatmul.mubr.f32.gmra.mrb[0].mxu0 %v1250
        %v1324 = vpop.f32.mrb[0].mxu0
        %v1325 = vadd.f32 0.0, %v1324
        %v1326 = vpop.f32.mrb[0].mxu0
        %1327 = vmatprep.mubr.f32.mxu0 0.0
        %1328 = vmatmul.mubr.f32.gmra.mrb[0].mxu0 %v1252
        %v1329 = vpop.f32.mrb[0].mxu0
        %v1330 = vadd.f32 0.0, %v1329
        %v1331 = vpop.f32.mrb[0].mxu0
        %1332 = vmatprep.mubr.f32.mxu0 0.0
        %1333 = vmatmul.mubr.f32.gmra.mrb[0].mxu0 %v1254
        %v1334 = vpop.f32.mrb[0].mxu0
        %v1335 = vadd.f32 0.0, %v1334
        %v1336 = vpop.f32.mrb[0].mxu0
        %1337 = vmatprep.mubr.f32.mxu0 0.0
        %1338 = vmatmul.mubr.f32.gmra.mrb[0].mxu0 %v1256
        %v1339 = vpop.f32.mrb[0].mxu0
        %v1340 = vadd.f32 0.0, %v1339
        %v1341 = vpop.f32.mrb[0].mxu0
        %1342 = vdwg.mxu0
        %v1343 = vadd.f32 %v420, %v1325
        %v1344 = vadd.f32 %v425, %v1330
        %v1345 = vadd.f32 %v430, %v1335
        %v1346 = vadd.f32 %v435, %v1340
        %v1347 = vmax.f32 %v1343, 0.0
        %v1348 = vmax.f32 %v1344, 0.0
        %v1349 = vmax.f32 %v1345, 0.0
        %v1350 = vmax.f32 %v1346, 0.0
        %1351 = vset.pattern.permute.xlu0 6
        %1352 = vperm.xlu0 %1351, %v328
        %v1353 = vpop.permute.xlu0 %1352
        %1355 = vset.pattern.permute.xlu0 6
        %1356 = vperm.xlu0 %1355, %v329
        %v1357 = vpop.permute.xlu0 %1356
        %1359 = vset.pattern.permute.xlu0 6
        %1360 = vperm.xlu0 %1359, %v330
        %v1361 = vpop.permute.xlu0 %1360
        %1363 = vset.pattern.permute.xlu0 6
        %1364 = vperm.xlu0 %1363, %v331
        %v1365 = vpop.permute.xlu0 %1364
        %v1367 = vmul.f32 %v1347, %v1353
        %v1368 = vmul.f32 %v1348, %v1357
        %v1369 = vmul.f32 %v1349, %v1361
        %v1370 = vmul.f32 %v1350, %v1365
        %v1371 = vmax.f32 %v1238, %v1367
        %v1372 = vmax.f32 %v1239, %v1368
        %v1373 = vmax.f32 %v1240, %v1369
        %v1374 = vmax.f32 %v1241, %v1370
        %1375 = vrot.lane.b32.xlu0 %v439, 72
        %v1376 = vpop.permute.xlu0 %1375
        %1377 = vrot.lane.b32.xlu0 %v440, 72
        %v1378 = vpop.permute.xlu0 %1377
        %1379 = vrot.lane.b32.xlu0 %v441, 72
        %v1380 = vpop.permute.xlu0 %1379
        %1381 = vrot.lane.b32.xlu0 %v442, 72
        %v1382 = vpop.permute.xlu0 %1381
        %v1383 = vsel %vm340, %v1376, 0
        %v1385 = vsel %vm340, %v1378, 0
        %v1387 = vsel %vm340, %v1380, 0
        %v1389 = vsel %vm340, %v1382, 0
        %1391 = vmatprep.subr.mxu0 0.0
        %1392 = vmatpush1.msra.mxu0 %v443
        %1393 = vmatprep.subr.mxu0 0.0
        %1394 = vmatpush1.msra.mxu0 0.0
        %1395 = vmatprep.subr.mxu0 0.0
        %1396 = vmatpush1.msra.mxu0 0.0
        %1397 = vmatprep.subr.mxu0 0.0
        %1398 = vmatpush1.msra.mxu0 0.0
        %1399 = vmatprep.subr.mxu0 0.0
        %1400 = vmatpush1.msra.mxu0 0.0
        %1401 = vmatprep.subr.mxu0 0.0
        %1402 = vmatpush1.msra.mxu0 0.0
        %1403 = vmatprep.subr.mxu0 0.0
        %1404 = vmatpush1.msra.mxu0 0.0
        %1405 = vmatprep.subr.mxu0 0.0
        %1406 = vmatpush1.msra.mxu0 0.0
        %1407 = vmatprep.subr.mxu0 0.0
        %1408 = vmatpush1.msra.mxu0 0.0
        %1409 = vmatprep.subr.mxu0 0.0
        %1410 = vmatpush1.msra.mxu0 0.0
        %1411 = vmatprep.subr.mxu0 0.0
        %1412 = vmatpush1.msra.mxu0 0.0
        %1413 = vmatprep.subr.mxu0 0.0
        %1414 = vmatpush1.msra.mxu0 0.0
        %1415 = vmatprep.subr.mxu0 0.0
        %1416 = vmatpush1.msra.mxu0 0.0
        %1417 = vmatprep.subr.mxu0 0.0
        %1418 = vmatpush1.msra.mxu0 0.0
        %1419 = vmatprep.subr.mxu0 0.0
        %1420 = vmatpush1.msra.mxu0 0.0
        %1421 = vmatprep.subr.mxu0 0.0
        %1422 = vmatpush1.msra.mxu0 0.0
        %1423 = vmatprep.subr.mxu0 0.0
        %1424 = vmatpush1.msra.mxu0 0.0
        %1425 = vmatprep.subr.mxu0 0.0
        %1426 = vmatpush1.msra.mxu0 0.0
        %1427 = vmatprep.subr.mxu0 0.0
        %1428 = vmatpush1.msra.mxu0 0.0
        %1429 = vmatprep.subr.mxu0 0.0
        %1430 = vmatpush1.msra.mxu0 0.0
        %1431 = vmatprep.subr.mxu0 0.0
        %1432 = vmatpush1.msra.mxu0 0.0
        %1433 = vmatprep.subr.mxu0 0.0
        %1434 = vmatpush1.msra.mxu0 0.0
        %1435 = vmatprep.subr.mxu0 0.0
        %1436 = vmatpush1.msra.mxu0 0.0
        %1437 = vmatprep.subr.mxu0 0.0
        %1438 = vmatpush1.msra.mxu0 0.0
        %1439 = vmatprep.subr.mxu0 0.0
        %1440 = vmatpush1.msra.mxu0 0.0
        %1441 = vmatprep.subr.mxu0 0.0
        %1442 = vmatpush1.msra.mxu0 0.0
        %1443 = vmatprep.subr.mxu0 0.0
        %1444 = vmatpush1.msra.mxu0 0.0
        %1445 = vmatprep.subr.mxu0 0.0
        %1446 = vmatpush1.msra.mxu0 0.0
        %1447 = vmatprep.subr.mxu0 0.0
        %1448 = vmatpush1.msra.mxu0 0.0
        %1449 = vmatprep.subr.mxu0 0.0
        %1450 = vmatpush1.msra.mxu0 0.0
        %1451 = vmatprep.subr.mxu0 0.0
        %1452 = vmatpush1.msra.mxu0 0.0
        %1453 = vmatprep.subr.mxu0 0.0
        %1454 = vmatpush1.msra.mxu0 0.0
        %1455 = vmatprep.mubr.f32.mxu0 0.0
        %1456 = vmatmul.mubr.f32.gmra.mrb[0].mxu0 %v1383
        %v1457 = vpop.f32.mrb[0].mxu0
        %v1458 = vadd.f32 0.0, %v1457
        %v1459 = vpop.f32.mrb[0].mxu0
        %1460 = vmatprep.mubr.f32.mxu0 0.0
        %1461 = vmatmul.mubr.f32.gmra.mrb[0].mxu0 %v1385
        %v1462 = vpop.f32.mrb[0].mxu0
        %v1463 = vadd.f32 0.0, %v1462
        %v1464 = vpop.f32.mrb[0].mxu0
        %1465 = vmatprep.mubr.f32.mxu0 0.0
        %1466 = vmatmul.mubr.f32.gmra.mrb[0].mxu0 %v1387
        %v1467 = vpop.f32.mrb[0].mxu0
        %v1468 = vadd.f32 0.0, %v1467
        %v1469 = vpop.f32.mrb[0].mxu0
        %1470 = vmatprep.mubr.f32.mxu0 0.0
        %1471 = vmatmul.mubr.f32.gmra.mrb[0].mxu0 %v1389
        %v1472 = vpop.f32.mrb[0].mxu0
        %v1473 = vadd.f32 0.0, %v1472
        %v1474 = vpop.f32.mrb[0].mxu0
        %1475 = vdwg.mxu0
        %v1476 = vadd.f32 %v420, %v1458
        %v1477 = vadd.f32 %v425, %v1463
        %v1478 = vadd.f32 %v430, %v1468
        %v1479 = vadd.f32 %v435, %v1473
        %v1480 = vmax.f32 %v1476, 0.0
        %v1481 = vmax.f32 %v1477, 0.0
        %v1482 = vmax.f32 %v1478, 0.0
        %v1483 = vmax.f32 %v1479, 0.0
        %1484 = vset.pattern.permute.xlu0 7
        %1485 = vperm.xlu0 %1484, %v328
        %v1486 = vpop.permute.xlu0 %1485
        %1488 = vset.pattern.permute.xlu0 7
        %1489 = vperm.xlu0 %1488, %v329
        %v1490 = vpop.permute.xlu0 %1489
        %1492 = vset.pattern.permute.xlu0 7
        %1493 = vperm.xlu0 %1492, %v330
        %v1494 = vpop.permute.xlu0 %1493
        %1496 = vset.pattern.permute.xlu0 7
        %1497 = vperm.xlu0 %1496, %v331
        %v1498 = vpop.permute.xlu0 %1497
        %v1500 = vmul.f32 %v1480, %v1486
        %v1501 = vmul.f32 %v1481, %v1490
        %v1502 = vmul.f32 %v1482, %v1494
        %v1503 = vmul.f32 %v1483, %v1498
        %v1504 = vmax.f32 %v1371, %v1500
        %v1505 = vmax.f32 %v1372, %v1501
        %v1506 = vmax.f32 %v1373, %v1502
        %v1507 = vmax.f32 %v1374, %v1503
        %1508 = vmatprep.subr.mxu0 0.0
        %1509 = vmatpush1.msra.mxu0 %v438
        %1510 = vmatprep.subr.mxu0 0.0
        %1511 = vmatpush1.msra.mxu0 0.0
        %1512 = vmatprep.subr.mxu0 0.0
        %1513 = vmatpush1.msra.mxu0 0.0
        %1514 = vmatprep.subr.mxu0 0.0
        %1515 = vmatpush1.msra.mxu0 0.0
        %1516 = vmatprep.subr.mxu0 0.0
        %1517 = vmatpush1.msra.mxu0 0.0
        %1518 = vmatprep.subr.mxu0 0.0
        %1519 = vmatpush1.msra.mxu0 0.0
        %1520 = vmatprep.subr.mxu0 0.0
        %1521 = vmatpush1.msra.mxu0 0.0
        %1522 = vmatprep.subr.mxu0 0.0
        %1523 = vmatpush1.msra.mxu0 0.0
        %1524 = vmatprep.subr.mxu0 0.0
        %1525 = vmatpush1.msra.mxu0 0.0
        %1526 = vmatprep.subr.mxu0 0.0
        %1527 = vmatpush1.msra.mxu0 0.0
        %1528 = vmatprep.subr.mxu0 0.0
        %1529 = vmatpush1.msra.mxu0 0.0
        %1530 = vmatprep.subr.mxu0 0.0
        %1531 = vmatpush1.msra.mxu0 0.0
        %1532 = vmatprep.subr.mxu0 0.0
        %1533 = vmatpush1.msra.mxu0 0.0
        %1534 = vmatprep.subr.mxu0 0.0
        %1535 = vmatpush1.msra.mxu0 0.0
        %1536 = vmatprep.subr.mxu0 0.0
        %1537 = vmatpush1.msra.mxu0 0.0
        %1538 = vmatprep.subr.mxu0 0.0
        %1539 = vmatpush1.msra.mxu0 0.0
        %1540 = vmatprep.subr.mxu0 0.0
        %1541 = vmatpush1.msra.mxu0 0.0
        %1542 = vmatprep.subr.mxu0 0.0
        %1543 = vmatpush1.msra.mxu0 0.0
        %1544 = vmatprep.subr.mxu0 0.0
        %1545 = vmatpush1.msra.mxu0 0.0
        %1546 = vmatprep.subr.mxu0 0.0
        %1547 = vmatpush1.msra.mxu0 0.0
        %1548 = vmatprep.subr.mxu0 0.0
        %1549 = vmatpush1.msra.mxu0 0.0
        %1550 = vmatprep.subr.mxu0 0.0
        %1551 = vmatpush1.msra.mxu0 0.0
        %1552 = vmatprep.subr.mxu0 0.0
        %1553 = vmatpush1.msra.mxu0 0.0
        %1554 = vmatprep.subr.mxu0 0.0
        %1555 = vmatpush1.msra.mxu0 0.0
        %1556 = vmatprep.subr.mxu0 0.0
        %1557 = vmatpush1.msra.mxu0 0.0
        %1558 = vmatprep.subr.mxu0 0.0
        %1559 = vmatpush1.msra.mxu0 0.0
        %1560 = vmatprep.subr.mxu0 0.0
        %1561 = vmatpush1.msra.mxu0 0.0
        %1562 = vmatprep.subr.mxu0 0.0
        %1563 = vmatpush1.msra.mxu0 0.0
        %1564 = vmatprep.subr.mxu0 0.0
        %1565 = vmatpush1.msra.mxu0 0.0
        %1566 = vmatprep.subr.mxu0 0.0
        %1567 = vmatpush1.msra.mxu0 0.0
        %1568 = vmatprep.subr.mxu0 0.0
        %1569 = vmatpush1.msra.mxu0 0.0
        %1570 = vmatprep.subr.mxu0 0.0
        %1571 = vmatpush1.msra.mxu0 0.0
        %1572 = vmatprep.mubr.f32.mxu0 0.0
        %1573 = vmatmul.mubr.f32.gmra.mrb[0].mxu0 %v342
        %v1574 = vpop.f32.mrb[0].mxu0
        %v1575 = vadd.f32 %v1504, %v1574
        %v1576 = vpop.f32.mrb[0].mxu0
        %1577 = vmatprep.mubr.f32.mxu0 0.0
        %1578 = vmatmul.mubr.f32.gmra.mrb[0].mxu0 %v345
        %v1579 = vpop.f32.mrb[0].mxu0
        %v1580 = vadd.f32 %v1505, %v1579
        %v1581 = vpop.f32.mrb[0].mxu0
        %1582 = vmatprep.mubr.f32.mxu0 0.0
        %1583 = vmatmul.mubr.f32.gmra.mrb[0].mxu0 %v348
        %v1584 = vpop.f32.mrb[0].mxu0
        %v1585 = vadd.f32 %v1506, %v1584
        %v1586 = vpop.f32.mrb[0].mxu0
        %1587 = vmatprep.mubr.f32.mxu0 0.0
        %1588 = vmatmul.mubr.f32.gmra.mrb[0].mxu0 %v351
        %v1589 = vpop.f32.mrb[0].mxu0
        %v1590 = vadd.f32 %v1507, %v1589
        %v1591 = vpop.f32.mrb[0].mxu0
        %1592 = vdwg.mxu0
        %1593 = vst [vmem:[%s304] sm:$0xff] %v1575
        %1594 = vst [vmem:[%s304 + $0x8] sm:$0xff] %v1580
        %1595 = vst [vmem:[%s304 + $0x10] sm:$0xff] %v1585
        %1596 = vst [vmem:[%s304 + $0x18] sm:$0xff] %v1590
        %s1597 = sand.u32 %s191, 1
        %s1598 = scalar_lea.sflag [#allocation3], %s1597
        %s1599 = sand.u32 %s191, 1
        %s1600 = smul.addr %s1599, 32
        %s1601 = scalar_lea.vmem [#allocation2], %s1600
        // Predicated region
        $region49: #{tpu_custom_call.1} parent=47 // pred_check
          %p1602 = pneg %p201
        $region50: #{tpu_custom_call.1} parent=47 // pred_check_branch
          %1604 = sbr.rel (%p1602) target = $region52
        $region51: #{tpu_custom_call.1} parent=47 // pred_region
          %s1605 = smul.u32 4, %s21
          %s1607 = ssub.s32 512, 512
          %1608 = vsyncadd %s1598, %s1607
          %s1609 = smul.addr %s1605, 128
          %s1610 = scalar_lea.hbm %s7, %s1609
          %s1611 = sshll.u32 %s1601, 4
          %s1612 = int_to_ptr.vmem [resolvable:$true] %s1611
          %1617 = dma.vmem_to_hbm [thread:$0]  %s1612, 512, %s1610, %s1598, 128, 128, 8
        $region52: #{tpu_custom_call.1} parent=47 // pred_fallthru
          _
      $region48: #{tpu_custom_call.1} parent=5 // pred_fallthru
        _
      %p1618 = scmp.le.s32.totalorder 2, %s16
      // Predicated region
      $region53: #{tpu_custom_call.1} parent=5 // pred_check
        %p1619 = pneg %p1618
      $region54: #{tpu_custom_call.1} parent=5 // pred_check_branch
        %1621 = sbr.rel (%p1619) target = $region56
      $region55: #{tpu_custom_call.1} parent=5 // pred_region
        %s1622 = ssub.s32 %s16, 2
        // Predicated region
        $region57: #{tpu_custom_call.1} parent=55 // pred_check
          %p1623 = pneg %p207
        $region58: #{tpu_custom_call.1} parent=55 // pred_check_branch
          %1625 = sbr.rel (%p1623) target = $region60
        $region59: #{tpu_custom_call.1} parent=55 // pred_region
          %s1626 = sand.u32 %s192, 1
          %s1627 = scalar_lea.sflag [#allocation3], %s1626
          %s1628 = sand.u32 %s192, 1
          %s1629 = smul.addr %s1628, 32
          %s1630 = scalar_lea.vmem [#allocation2], %s1629
          %1631 = dma.done %s1627, 512
        $region60: #{tpu_custom_call.1} parent=55 // pred_fallthru
          _
      $region56: #{tpu_custom_call.1} parent=5 // pred_fallthru
        _
    $region6: #{tpu_custom_call.1} parent=1 // loop_footer
      %s20 = sadd.s32 1, %s16
    $region7: #{tpu_custom_call.1} parent=1 // loop_footer_branch
      %15 = sbr.rel target = $region3
    $region8: #{tpu_custom_call.1} parent=1 // loop_exit
      _
    %1632 = vsyncpa [#allocation3], 1
    %s1633 = scalar_lea.sflag [#allocation3], 1
    %1634 = vsyncpa %s1633, 1

</llo_original>
